<compile_context>
chip_gen: v7x
topology: tpu7x:2x2x1
jax: 0.10.0
libtpu: 0.0.40
codegen_flags: <defaults>
</compile_context>

<pallas_src>
import functools

import jax
import jax.numpy as jnp
from jax.experimental import pallas as pl
from jax.experimental.pallas import tpu as pltpu


def _round_up(x, m):
    return (x + m - 1) // m * m


# -----------------------------------------------------------------------------
# Pallas kernel: one (batch element, time tile) step
# -----------------------------------------------------------------------------
def _grb_kernel(n_convs, c_pad, t_tile, h_pad,
                x_ref, wc_ref, bc_ref, ws_ref, bs_ref, o_ref,
                carry_ref, extf_ref, extg_ref):
    """Fused GatedResidualBlock on one (c_pad, t_tile) tile.

    x_ref     : (c_pad, t_tile)            f32 input tile.
    wc_ref    : (4*n_convs, c_pad, c_pad)  bf16 conv weights
                [4i+0]=f prev-tap, [4i+1]=f cur-tap, [4i+2]=g prev, [4i+3]=g cur.
    bc_ref    : (2*c_pad, n_convs)         f32 biases, rows [0:c]=f, [c:2c]=g.
    ws_ref    : (c_pad, c_pad)             bf16 1x1 scale-conv weight.
    bs_ref    : (c_pad, 1)                 f32 scale-conv bias.
    o_ref     : (c_pad, t_tile)            f32 output tile.
    carry_ref : (2*c_pad, 2**n_convs - 1)  bf16; layer i owns cols
                [2**i - 1, 2**(i+1) - 1) = last 2**i cols of that layer's input
                from the previous time tile of the same batch element.
    extf_ref  : (c_pad, h_pad + t_tile)    bf16 staging [history | current] (f).
    extg_ref  : (c_pad, h_pad + t_tile)    bf16 staging [history | current] (g).
    """
    t_step = pl.program_id(1)

    @pl.when(t_step == 0)
    def _():  # new batch element: the sequence starts here -> zero history
        carry_ref[...] = jnp.zeros_like(carry_ref)

    x = x_ref[...]                                   # (c, T) f32
    f = x
    g = x

    for i in range(n_convs):
        d = 2 ** i                                   # dilation of conv layer i
        off = d - 1                                  # this layer's carry slot

        # Previous-tile tails of this layer's input (zeros at the first tile).
        f_hist = carry_ref[:c_pad, off:off + d]      # (c, d) bf16
        g_hist = carry_ref[c_pad:, off:off + d]

        f16 = f.astype(jnp.bfloat16)                 # MXU operand precision
        g16 = g.astype(jnp.bfloat16)

        # Stash this tile's tails for the next grid step (read old value above).
        carry_ref[:c_pad, off:off + d] = f16[:, t_tile - d:]
        carry_ref[c_pad:, off:off + d] = g16[:, t_tile - d:]

        # Staging buffer [history | current]: the dilated "previous sample" row
        # is then a plain shifted slice -- no roll, no concat, no iota mask.
        extf_ref[:, h_pad - d:h_pad] = f_hist
        extf_ref[:, h_pad:] = f16
        extg_ref[:, h_pad - d:h_pad] = g_hist
        extg_ref[:, h_pad:] = g16
        f_prev16 = extf_ref[:, h_pad - d:h_pad + t_tile - d]   # (c, T) bf16
        g_prev16 = extg_ref[:, h_pad - d:h_pad + t_tile - d]

        # Four accumulating (C,C)x(C,T) MXU dots: no block-diag structural zeros.
        bf = bc_ref[:c_pad, i:i + 1]                 # (c, 1) f32
        bg = bc_ref[c_pad:, i:i + 1]
        f = (jnp.dot(wc_ref[4 * i + 0], f_prev16, preferred_element_type=jnp.float32)
             + jnp.dot(wc_ref[4 * i + 1], f16, preferred_element_type=jnp.float32)
             + bf)
        g = (jnp.dot(wc_ref[4 * i + 2], g_prev16, preferred_element_type=jnp.float32)
             + jnp.dot(wc_ref[4 * i + 3], g16, preferred_element_type=jnp.float32)
             + bg)
        # TODO(synk): optionally carry f/g in bf16 between layers on v7x to
        # shrink live intermediates further; validate numerics for deep stacks.

    z = jnp.tanh(f) * jax.nn.sigmoid(g)              # gate math in f32
    y = (jnp.dot(ws_ref[...], z.astype(jnp.bfloat16),
                 preferred_element_type=jnp.float32)
         + bs_ref[...]
         + x)                                        # residual in f32
    o_ref[...] = y.astype(o_ref.dtype)


# -----------------------------------------------------------------------------
# Parameter packing
# -----------------------------------------------------------------------------
def _pack_params(f_params, g_params, scale_w, scale_b, c_pad):
    fW, fB = f_params
    gW, gB = g_params
    n_convs = len(fW)
    c = c_pad
    w = jnp.zeros((4 * n_convs, c, c), jnp.float32)
    b = jnp.zeros((2 * c, n_convs), jnp.float32)
    for i in range(n_convs):
        for j, (wt, bt) in enumerate(((fW[i], fB[i]), (gW[i], gB[i]))):
            cout, cin = wt.shape[0], wt.shape[1]
            assert cout <= c and cin <= c, "conv channels exceed padded width"
            w = w.at[4 * i + 2 * j + 0, :cout, :cin].set(wt[:, :, 0])  # prev tap
            w = w.at[4 * i + 2 * j + 1, :cout, :cin].set(wt[:, :, 1])  # cur  tap
            b = b.at[j * c:j * c + cout, i].set(bt)
    cout, cin = scale_w.shape[0], scale_w.shape[1]
    assert cout <= c and cin <= c
    ws = jnp.zeros((c, c), jnp.float32).at[:cout, :cin].set(scale_w[:, :, 0])
    bs = jnp.zeros((c, 1), jnp.float32).at[:cout, 0].set(scale_b)
    return w.astype(jnp.bfloat16), b, ws.astype(jnp.bfloat16), bs


# -----------------------------------------------------------------------------
# Wrapper
# -----------------------------------------------------------------------------
def gated_residual_block(x_nct, f_params, g_params, scale_w, scale_b, layer=None,
                         *, t_tile=2048):
    """GatedResidualBlock forward. x_nct: (N, Cin, T) f32 (PyTorch NCT layout)."""
    del layer  # conv count / dilations derived from the parameter lists
    N, Cin, T = x_nct.shape
    fW, _ = f_params
    n_convs = len(fW)
    Cres = fW[0].shape[0]

    c_pad = _round_up(max(Cin, Cres), 32)            # sublane + bf16-pack aligned
    d_max = 2 ** (n_convs - 1)
    # TODO(synk): for dilations larger than one time tile, carry multiple tiles
    # of per-layer history instead of forcing t_tile >= d_max.
    t_tile = _round_up(max(min(t_tile, T), d_max, 128), 128)
    h_pad = _round_up(d_max, 128)
    t_pad = _round_up(T, t_tile)
    n_t = t_pad // t_tile

    # Only pads (no relayout / transposes): channels to c_pad, time to t_pad.
    x_p = jnp.pad(x_nct, ((0, 0), (0, c_pad - Cin), (0, t_pad - T)))

    w_conv, b_conv, w_sc, b_sc = _pack_params(
        f_params, g_params, scale_w, scale_b, c_pad)

    kernel = functools.partial(_grb_kernel, n_convs, c_pad, t_tile, h_pad)

    # --- VMEM budget -> explicit scoped limit sized to the chosen tiles -------
    act_blk = c_pad * t_tile * 4
    ext_b = 2 * c_pad * (h_pad + t_tile) * 2
    carry_b = 2 * c_pad * (2 ** n_convs - 1) * 2
    param_b = (int(w_conv.size) * 2 + int(b_conv.size) * 4
               + int(w_sc.size) * 2 + int(b_sc.size) * 4)
    vmem_est = 4 * act_blk + 2 * param_b + ext_b + carry_b + 10 * act_blk
    vmem_limit = int(min(112 * 2 ** 20, max(32 * 2 ** 20, 2 * vmem_est)))

    steps = N * n_t
    flops = steps * (4 * n_convs + 1) * 2 * c_pad * c_pad * t_tile
    transcendentals = steps * 2 * c_pad * t_tile
    bytes_accessed = 2 * N * c_pad * t_pad * 4 + param_b

    out = pl.pallas_call(
        kernel,
        out_shape=jax.ShapeDtypeStruct((N, c_pad, t_pad), jnp.float32),
        grid=(N, n_t),
        in_specs=[
            pl.BlockSpec((None, c_pad, t_tile), lambda b, t: (b, 0, t)),
            pl.BlockSpec((4 * n_convs, c_pad, c_pad), lambda b, t: (0, 0, 0)),
            pl.BlockSpec((2 * c_pad, n_convs), lambda b, t: (0, 0)),
            pl.BlockSpec((c_pad, c_pad), lambda b, t: (0, 0)),
            pl.BlockSpec((c_pad, 1), lambda b, t: (0, 0)),
        ],
        out_specs=pl.BlockSpec((None, c_pad, t_tile), lambda b, t: (b, 0, t)),
        scratch_shapes=[
            pltpu.VMEM((2 * c_pad, 2 ** n_convs - 1), jnp.bfloat16),   # carry
            pltpu.VMEM((c_pad, h_pad + t_tile), jnp.bfloat16),         # ext f
            pltpu.VMEM((c_pad, h_pad + t_tile), jnp.bfloat16),         # ext g
        ],
        compiler_params=pltpu.CompilerParams(
            dimension_semantics=("parallel", "arbitrary"),
            vmem_limit_bytes=vmem_limit),
        cost_estimate=pl.CostEstimate(
            flops=flops, transcendentals=transcendentals,
            bytes_accessed=bytes_accessed),
    )(x_p, w_conv, b_conv, w_sc, b_sc)

    return out[:, :Cin, :T]


# -----------------------------------------------------------------------------
# Deterministic parameter init (matches the module's __init__ shapes)
# -----------------------------------------------------------------------------
def init_dcc_params(key, in_channels, res_channels, layer):
    """Weights/biases for DelatedCausalConv: layer+1 convs, kernel_size=2."""
    chans = (
        [(in_channels, res_channels)]
        + [(res_channels, res_channels) for _ in range(1, layer)]
        + [(res_channels, in_channels)]
    )
    weights, biases = [], []
    for (cin, cout) in chans:
        key, k1, k2 = jax.random.split(key, 3)
        bound = 1.0 / (cin * 2) ** 0.5
        weights.append(
            jax.random.uniform(k1, (cout, cin, 2), jnp.float32, -bound, bound)
        )
        biases.append(jax.random.uniform(k2, (cout,), jnp.float32, -bound, bound))
    return key, weights, biases


# -----------------------------------------------------------------------------
# Pure-JAX reference (independent formulation via lax.conv_general_dilated)
# -----------------------------------------------------------------------------
def _dcc_ref(x, weights, biases):
    for i, (w, b) in enumerate(zip(weights, biases)):
        d = 2 ** i
        x = (
            jax.lax.conv_general_dilated(
                x, w, window_strides=(1,), padding=[(d, 0)], rhs_dilation=(d,),
                dimension_numbers=("NCH", "OIH", "NCH"),
            )
            + b[None, :, None]
        )
    return x


def _grb_ref(x, fW, fB, gW, gB, sW, sB):
    z = jnp.tanh(_dcc_ref(x, fW, fB)) * jax.nn.sigmoid(_dcc_ref(x, gW, gB))
    scaled = (
        jax.lax.conv_general_dilated(
            z, sW, window_strides=(1,), padding=[(0, 0)],
            dimension_numbers=("NCH", "OIH", "NCH"),
        )
        + sB[None, :, None]
    )
    return scaled + x


# -----------------------------------------------------------------------------
# Main
# -----------------------------------------------------------------------------
if __name__ == "__main__":
    # Small, but T > t_tile so the cross-tile dilation carry path is exercised.
    N, Cin, Cres, T, LAYER = 2, 8, 16, 200, 2

    key = jax.random.PRNGKey(0)
    key, kx = jax.random.split(key)
    x = jax.random.normal(kx, (N, Cin, T), jnp.float32)  # PyTorch NCT layout

    key, fW, fB = init_dcc_params(key, Cin, Cres, LAYER)
    key, gW, gB = init_dcc_params(key, Cin, Cres, LAYER)
    key, ksw, ksb = jax.random.split(key, 3)
    scale_w = jax.random.uniform(ksw, (Cin, Cin, 1), jnp.float32, -0.35, 0.35)
    scale_b = jax.random.uniform(ksb, (Cin,), jnp.float32, -0.35, 0.35)

    out = gated_residual_block(x, (fW, fB), (gW, gB), scale_w, scale_b, LAYER,
                               t_tile=128)
    out = jax.block_until_ready(out)

    ref = _grb_ref(x, fW, fB, gW, gB, scale_w, scale_b)
    ref = jax.block_until_ready(ref)

    assert out.shape == (N, Cin, T)
    # bf16 matmul operands (f32 accumulation) -> slightly looser tolerance.
    assert jnp.allclose(out, ref, atol=5e-2, rtol=5e-2), (
        f"max abs err = {jnp.max(jnp.abs(out - ref))}"
    )
    print("KERNEL_OK")
</pallas_src>

<mosaic_0001>
module attributes {stable_mosaic.version = 11 : i64} {
  func.func @_grb_kernel(%arg0: i32, %arg1: i32, %arg2: memref<1x32x128xf32, #tpu.memory_space<vmem>>, %arg3: memref<12x32x32xbf16, #tpu.memory_space<vmem>>, %arg4: memref<64x3xf32, #tpu.memory_space<vmem>>, %arg5: memref<32x32xbf16, #tpu.memory_space<vmem>>, %arg6: memref<32x1xf32, #tpu.memory_space<vmem>>, %arg7: memref<1x32x128xf32, #tpu.memory_space<vmem>>, %arg8: memref<64x7xbf16, #tpu.memory_space<vmem>>, %arg9: memref<32x256xbf16, #tpu.memory_space<vmem>>, %arg10: memref<32x256xbf16, #tpu.memory_space<vmem>>) attributes {dimension_semantics = [#tpu.dimension_semantics<parallel>, #tpu.dimension_semantics<arbitrary>], iteration_bounds = array<i64: 2, 2>, scalar_prefetch = 0 : i64, scratch_operands = 3 : i64, tpu.core_type = #tpu.core_type<tc>, window_params = [{transform_indices = @transform_0, window_bounds = array<i64: 1, 32, 128>}, {pipeline_mode = #tpu.pipeline_mode<synchronous>, transform_indices = @transform_1, window_bounds = array<i64: 12, 32, 32>}, {pipeline_mode = #tpu.pipeline_mode<synchronous>, transform_indices = @transform_2, window_bounds = array<i64: 64, 3>}, {pipeline_mode = #tpu.pipeline_mode<synchronous>, transform_indices = @transform_3, window_bounds = array<i64: 32, 32>}, {pipeline_mode = #tpu.pipeline_mode<synchronous>, transform_indices = @transform_4, window_bounds = array<i64: 32, 1>}, {transform_indices = @transform_5, window_bounds = array<i64: 1, 32, 128>}]} {
    %c0_i32 = arith.constant 0 : i32
    %0 = arith.cmpi eq, %arg1, %c0_i32 : i32
    %1 = arith.extui %0 : i1 to i32
    %c0_i32_0 = arith.constant 0 : i32
    %2 = arith.cmpi ne, %1, %c0_i32_0 : i32
    scf.if %2 {
      %cst_115 = arith.constant 0.000000e+00 : bf16
      %124 = vector.broadcast %cst_115 : bf16 to vector<64x7xbf16>
      %c0_116 = arith.constant 0 : index
      %c0_117 = arith.constant 0 : index
      %125 = vector.load %arg8[%c0_116, %c0_117] : memref<64x7xbf16, #tpu.memory_space<vmem>>, vector<64x7xbf16>
      tpu.vector_store %arg8[%c0_116, %c0_117], %124 {strides = array<i32>} : memref<64x7xbf16, #tpu.memory_space<vmem>>, vector<64x7xbf16>,
    } else {
    }
    %c0 = arith.constant 0 : index
    %c0_1 = arith.constant 0 : index
    %c0_2 = arith.constant 0 : index
    %3 = vector.load %arg2[%c0, %c0_1, %c0_2] : memref<1x32x128xf32, #tpu.memory_space<vmem>>, vector<1x32x128xf32>
    %4 = vector.shape_cast %3 : vector<1x32x128xf32> to vector<32x128xf32>
    %c0_3 = arith.constant 0 : index
    %c0_4 = arith.constant 0 : index
    %5 = vector.load %arg8[%c0_3, %c0_4] : memref<64x7xbf16, #tpu.memory_space<vmem>>, vector<32x1xbf16>
    %c32 = arith.constant 32 : index
    %c0_5 = arith.constant 0 : index
    %6 = vector.load %arg8[%c32, %c0_5] : memref<64x7xbf16, #tpu.memory_space<vmem>>, vector<32x1xbf16>
    %7 = arith.truncf %4 : vector<32x128xf32> to vector<32x128xbf16>
    %8 = arith.truncf %4 : vector<32x128xf32> to vector<32x128xbf16>
    %9 = vector.extract_strided_slice %7 {offsets = [0, 127], sizes = [32, 1], strides = [1, 1]} : vector<32x128xbf16> to vector<32x1xbf16>
    %c0_6 = arith.constant 0 : index
    %c0_7 = arith.constant 0 : index
    %10 = vector.load %arg8[%c0_6, %c0_7] : memref<64x7xbf16, #tpu.memory_space<vmem>>, vector<32x1xbf16>
    tpu.vector_store %arg8[%c0_6, %c0_7], %9 {strides = array<i32>} : memref<64x7xbf16, #tpu.memory_space<vmem>>, vector<32x1xbf16>,
    %11 = vector.extract_strided_slice %8 {offsets = [0, 127], sizes = [32, 1], strides = [1, 1]} : vector<32x128xbf16> to vector<32x1xbf16>
    %c32_8 = arith.constant 32 : index
    %c0_9 = arith.constant 0 : index
    %12 = vector.load %arg8[%c32_8, %c0_9] : memref<64x7xbf16, #tpu.memory_space<vmem>>, vector<32x1xbf16>
    tpu.vector_store %arg8[%c32_8, %c0_9], %11 {strides = array<i32>} : memref<64x7xbf16, #tpu.memory_space<vmem>>, vector<32x1xbf16>,
    %c0_10 = arith.constant 0 : index
    %c127 = arith.constant 127 : index
    %13 = vector.load %arg9[%c0_10, %c127] : memref<32x256xbf16, #tpu.memory_space<vmem>>, vector<32x1xbf16>
    tpu.vector_store %arg9[%c0_10, %c127], %5 {strides = array<i32>} : memref<32x256xbf16, #tpu.memory_space<vmem>>, vector<32x1xbf16>,
    %c0_11 = arith.constant 0 : index
    %c128 = arith.constant 128 : index
    %14 = vector.load %arg9[%c0_11, %c128] : memref<32x256xbf16, #tpu.memory_space<vmem>>, vector<32x128xbf16>
    tpu.vector_store %arg9[%c0_11, %c128], %7 {strides = array<i32>} : memref<32x256xbf16, #tpu.memory_space<vmem>>, vector<32x128xbf16>,
    %c0_12 = arith.constant 0 : index
    %c127_13 = arith.constant 127 : index
    %15 = vector.load %arg10[%c0_12, %c127_13] : memref<32x256xbf16, #tpu.memory_space<vmem>>, vector<32x1xbf16>
    tpu.vector_store %arg10[%c0_12, %c127_13], %6 {strides = array<i32>} : memref<32x256xbf16, #tpu.memory_space<vmem>>, vector<32x1xbf16>,
    %c0_14 = arith.constant 0 : index
    %c128_15 = arith.constant 128 : index
    %16 = vector.load %arg10[%c0_14, %c128_15] : memref<32x256xbf16, #tpu.memory_space<vmem>>, vector<32x128xbf16>
    tpu.vector_store %arg10[%c0_14, %c128_15], %8 {strides = array<i32>} : memref<32x256xbf16, #tpu.memory_space<vmem>>, vector<32x128xbf16>,
    %c0_16 = arith.constant 0 : index
    %c127_17 = arith.constant 127 : index
    %17 = vector.load %arg9[%c0_16, %c127_17] : memref<32x256xbf16, #tpu.memory_space<vmem>>, vector<32x128xbf16>
    %c0_18 = arith.constant 0 : index
    %c127_19 = arith.constant 127 : index
    %18 = vector.load %arg10[%c0_18, %c127_19] : memref<32x256xbf16, #tpu.memory_space<vmem>>, vector<32x128xbf16>
    %c0_20 = arith.constant 0 : index
    %c0_21 = arith.constant 0 : index
    %19 = vector.load %arg4[%c0_20, %c0_21] : memref<64x3xf32, #tpu.memory_space<vmem>>, vector<32x1xf32>
    %c32_22 = arith.constant 32 : index
    %c0_23 = arith.constant 0 : index
    %20 = vector.load %arg4[%c32_22, %c0_23] : memref<64x3xf32, #tpu.memory_space<vmem>>, vector<32x1xf32>
    %c0_24 = arith.constant 0 : index
    %c0_25 = arith.constant 0 : index
    %c0_26 = arith.constant 0 : index
    %21 = vector.load %arg3[%c0_24, %c0_25, %c0_26] : memref<12x32x32xbf16, #tpu.memory_space<vmem>>, vector<1x32x32xbf16>
    %22 = vector.shape_cast %21 : vector<1x32x32xbf16> to vector<32x32xbf16>
    %cst = arith.constant dense<0.000000e+00> : vector<32x128xf32>
    %23 = tpu.matmul %22, %17, %cst {dimension_numbers = #tpu.dot_dimension_numbers<[1], [0], [0], [1], [0, 0, 1, 1], [], []>} : vector<32x32xbf16>, vector<32x128xbf16>, vector<32x128xf32> -> vector<32x128xf32>
    %c1 = arith.constant 1 : index
    %c0_27 = arith.constant 0 : index
    %c0_28 = arith.constant 0 : index
    %24 = vector.load %arg3[%c1, %c0_27, %c0_28] : memref<12x32x32xbf16, #tpu.memory_space<vmem>>, vector<1x32x32xbf16>
    %25 = vector.shape_cast %24 : vector<1x32x32xbf16> to vector<32x32xbf16>
    %cst_29 = arith.constant dense<0.000000e+00> : vector<32x128xf32>
    %26 = tpu.matmul %25, %7, %cst_29 {dimension_numbers = #tpu.dot_dimension_numbers<[1], [0], [0], [1], [0, 0, 1, 1], [], []>} : vector<32x32xbf16>, vector<32x128xbf16>, vector<32x128xf32> -> vector<32x128xf32>
    %27 = arith.addf %23, %26 : vector<32x128xf32>
    %28 = vector.broadcast %19 : vector<32x1xf32> to vector<32x128xf32>
    %29 = arith.addf %27, %28 : vector<32x128xf32>
    %c2 = arith.constant 2 : index
    %c0_30 = arith.constant 0 : index
    %c0_31 = arith.constant 0 : index
    %30 = vector.load %arg3[%c2, %c0_30, %c0_31] : memref<12x32x32xbf16, #tpu.memory_space<vmem>>, vector<1x32x32xbf16>
    %31 = vector.shape_cast %30 : vector<1x32x32xbf16> to vector<32x32xbf16>
    %cst_32 = arith.constant dense<0.000000e+00> : vector<32x128xf32>
    %32 = tpu.matmul %31, %18, %cst_32 {dimension_numbers = #tpu.dot_dimension_numbers<[1], [0], [0], [1], [0, 0, 1, 1], [], []>} : vector<32x32xbf16>, vector<32x128xbf16>, vector<32x128xf32> -> vector<32x128xf32>
    %c3 = arith.constant 3 : index
    %c0_33 = arith.constant 0 : index
    %c0_34 = arith.constant 0 : index
    %33 = vector.load %arg3[%c3, %c0_33, %c0_34] : memref<12x32x32xbf16, #tpu.memory_space<vmem>>, vector<1x32x32xbf16>
    %34 = vector.shape_cast %33 : vector<1x32x32xbf16> to vector<32x32xbf16>
    %cst_35 = arith.constant dense<0.000000e+00> : vector<32x128xf32>
    %35 = tpu.matmul %34, %8, %cst_35 {dimension_numbers = #tpu.dot_dimension_numbers<[1], [0], [0], [1], [0, 0, 1, 1], [], []>} : vector<32x32xbf16>, vector<32x128xbf16>, vector<32x128xf32> -> vector<32x128xf32>
    %36 = arith.addf %32, %35 : vector<32x128xf32>
    %37 = vector.broadcast %20 : vector<32x1xf32> to vector<32x128xf32>
    %38 = arith.addf %36, %37 : vector<32x128xf32>
    %c0_36 = arith.constant 0 : index
    %c1_37 = arith.constant 1 : index
    %39 = vector.load %arg8[%c0_36, %c1_37] : memref<64x7xbf16, #tpu.memory_space<vmem>>, vector<32x2xbf16>
    %c32_38 = arith.constant 32 : index
    %c1_39 = arith.constant 1 : index
    %40 = vector.load %arg8[%c32_38, %c1_39] : memref<64x7xbf16, #tpu.memory_space<vmem>>, vector<32x2xbf16>
    %41 = arith.truncf %29 : vector<32x128xf32> to vector<32x128xbf16>
    %42 = arith.truncf %38 : vector<32x128xf32> to vector<32x128xbf16>
    %43 = vector.extract_strided_slice %41 {offsets = [0, 126], sizes = [32, 2], strides = [1, 1]} : vector<32x128xbf16> to vector<32x2xbf16>
    %c0_40 = arith.constant 0 : index
    %c1_41 = arith.constant 1 : index
    %44 = vector.load %arg8[%c0_40, %c1_41] : memref<64x7xbf16, #tpu.memory_space<vmem>>, vector<32x2xbf16>
    tpu.vector_store %arg8[%c0_40, %c1_41], %43 {strides = array<i32>} : memref<64x7xbf16, #tpu.memory_space<vmem>>, vector<32x2xbf16>,
    %45 = vector.extract_strided_slice %42 {offsets = [0, 126], sizes = [32, 2], strides = [1, 1]} : vector<32x128xbf16> to vector<32x2xbf16>
    %c32_42 = arith.constant 32 : index
    %c1_43 = arith.constant 1 : index
    %46 = vector.load %arg8[%c32_42, %c1_43] : memref<64x7xbf16, #tpu.memory_space<vmem>>, vector<32x2xbf16>
    tpu.vector_store %arg8[%c32_42, %c1_43], %45 {strides = array<i32>} : memref<64x7xbf16, #tpu.memory_space<vmem>>, vector<32x2xbf16>,
    %c0_44 = arith.constant 0 : index
    %c126 = arith.constant 126 : index
    %47 = vector.load %arg9[%c0_44, %c126] : memref<32x256xbf16, #tpu.memory_space<vmem>>, vector<32x2xbf16>
    tpu.vector_store %arg9[%c0_44, %c126], %39 {strides = array<i32>} : memref<32x256xbf16, #tpu.memory_space<vmem>>, vector<32x2xbf16>,
    %c0_45 = arith.constant 0 : index
    %c128_46 = arith.constant 128 : index
    %48 = vector.load %arg9[%c0_45, %c128_46] : memref<32x256xbf16, #tpu.memory_space<vmem>>, vector<32x128xbf16>
    tpu.vector_store %arg9[%c0_45, %c128_46], %41 {strides = array<i32>} : memref<32x256xbf16, #tpu.memory_space<vmem>>, vector<32x128xbf16>,
    %c0_47 = arith.constant 0 : index
    %c126_48 = arith.constant 126 : index
    %49 = vector.load %arg10[%c0_47, %c126_48] : memref<32x256xbf16, #tpu.memory_space<vmem>>, vector<32x2xbf16>
    tpu.vector_store %arg10[%c0_47, %c126_48], %40 {strides = array<i32>} : memref<32x256xbf16, #tpu.memory_space<vmem>>, vector<32x2xbf16>,
    %c0_49 = arith.constant 0 : index
    %c128_50 = arith.constant 128 : index
    %50 = vector.load %arg10[%c0_49, %c128_50] : memref<32x256xbf16, #tpu.memory_space<vmem>>, vector<32x128xbf16>
    tpu.vector_store %arg10[%c0_49, %c128_50], %42 {strides = array<i32>} : memref<32x256xbf16, #tpu.memory_space<vmem>>, vector<32x128xbf16>,
    %c0_51 = arith.constant 0 : index
    %c126_52 = arith.constant 126 : index
    %51 = vector.load %arg9[%c0_51, %c126_52] : memref<32x256xbf16, #tpu.memory_space<vmem>>, vector<32x128xbf16>
    %c0_53 = arith.constant 0 : index
    %c126_54 = arith.constant 126 : index
    %52 = vector.load %arg10[%c0_53, %c126_54] : memref<32x256xbf16, #tpu.memory_space<vmem>>, vector<32x128xbf16>
    %c0_55 = arith.constant 0 : index
    %c1_56 = arith.constant 1 : index
    %53 = vector.load %arg4[%c0_55, %c1_56] : memref<64x3xf32, #tpu.memory_space<vmem>>, vector<32x1xf32>
    %c32_57 = arith.constant 32 : index
    %c1_58 = arith.constant 1 : index
    %54 = vector.load %arg4[%c32_57, %c1_58] : memref<64x3xf32, #tpu.memory_space<vmem>>, vector<32x1xf32>
    %c4 = arith.constant 4 : index
    %c0_59 = arith.constant 0 : index
    %c0_60 = arith.constant 0 : index
    %55 = vector.load %arg3[%c4, %c0_59, %c0_60] : memref<12x32x32xbf16, #tpu.memory_space<vmem>>, vector<1x32x32xbf16>
    %56 = vector.shape_cast %55 : vector<1x32x32xbf16> to vector<32x32xbf16>
    %cst_61 = arith.constant dense<0.000000e+00> : vector<32x128xf32>
    %57 = tpu.matmul %56, %51, %cst_61 {dimension_numbers = #tpu.dot_dimension_numbers<[1], [0], [0], [1], [0, 0, 1, 1], [], []>} : vector<32x32xbf16>, vector<32x128xbf16>, vector<32x128xf32> -> vector<32x128xf32>
    %c5 = arith.constant 5 : index
    %c0_62 = arith.constant 0 : index
    %c0_63 = arith.constant 0 : index
    %58 = vector.load %arg3[%c5, %c0_62, %c0_63] : memref<12x32x32xbf16, #tpu.memory_space<vmem>>, vector<1x32x32xbf16>
    %59 = vector.shape_cast %58 : vector<1x32x32xbf16> to vector<32x32xbf16>
    %cst_64 = arith.constant dense<0.000000e+00> : vector<32x128xf32>
    %60 = tpu.matmul %59, %41, %cst_64 {dimension_numbers = #tpu.dot_dimension_numbers<[1], [0], [0], [1], [0, 0, 1, 1], [], []>} : vector<32x32xbf16>, vector<32x128xbf16>, vector<32x128xf32> -> vector<32x128xf32>
    %61 = arith.addf %57, %60 : vector<32x128xf32>
    %62 = vector.broadcast %53 : vector<32x1xf32> to vector<32x128xf32>
    %63 = arith.addf %61, %62 : vector<32x128xf32>
    %c6 = arith.constant 6 : index
    %c0_65 = arith.constant 0 : index
    %c0_66 = arith.constant 0 : index
    %64 = vector.load %arg3[%c6, %c0_65, %c0_66] : memref<12x32x32xbf16, #tpu.memory_space<vmem>>, vector<1x32x32xbf16>
    %65 = vector.shape_cast %64 : vector<1x32x32xbf16> to vector<32x32xbf16>
    %cst_67 = arith.constant dense<0.000000e+00> : vector<32x128xf32>
    %66 = tpu.matmul %65, %52, %cst_67 {dimension_numbers = #tpu.dot_dimension_numbers<[1], [0], [0], [1], [0, 0, 1, 1], [], []>} : vector<32x32xbf16>, vector<32x128xbf16>, vector<32x128xf32> -> vector<32x128xf32>
    %c7 = arith.constant 7 : index
    %c0_68 = arith.constant 0 : index
    %c0_69 = arith.constant 0 : index
    %67 = vector.load %arg3[%c7, %c0_68, %c0_69] : memref<12x32x32xbf16, #tpu.memory_space<vmem>>, vector<1x32x32xbf16>
    %68 = vector.shape_cast %67 : vector<1x32x32xbf16> to vector<32x32xbf16>
    %cst_70 = arith.constant dense<0.000000e+00> : vector<32x128xf32>
    %69 = tpu.matmul %68, %42, %cst_70 {dimension_numbers = #tpu.dot_dimension_numbers<[1], [0], [0], [1], [0, 0, 1, 1], [], []>} : vector<32x32xbf16>, vector<32x128xbf16>, vector<32x128xf32> -> vector<32x128xf32>
    %70 = arith.addf %66, %69 : vector<32x128xf32>
    %71 = vector.broadcast %54 : vector<32x1xf32> to vector<32x128xf32>
    %72 = arith.addf %70, %71 : vector<32x128xf32>
    %c0_71 = arith.constant 0 : index
    %c3_72 = arith.constant 3 : index
    %73 = vector.load %arg8[%c0_71, %c3_72] : memref<64x7xbf16, #tpu.memory_space<vmem>>, vector<32x4xbf16>
    %c32_73 = arith.constant 32 : index
    %c3_74 = arith.constant 3 : index
    %74 = vector.load %arg8[%c32_73, %c3_74] : memref<64x7xbf16, #tpu.memory_space<vmem>>, vector<32x4xbf16>
    %75 = arith.truncf %63 : vector<32x128xf32> to vector<32x128xbf16>
    %76 = arith.truncf %72 : vector<32x128xf32> to vector<32x128xbf16>
    %77 = vector.extract_strided_slice %75 {offsets = [0, 124], sizes = [32, 4], strides = [1, 1]} : vector<32x128xbf16> to vector<32x4xbf16>
    %c0_75 = arith.constant 0 : index
    %c3_76 = arith.constant 3 : index
    %78 = vector.load %arg8[%c0_75, %c3_76] : memref<64x7xbf16, #tpu.memory_space<vmem>>, vector<32x4xbf16>
    tpu.vector_store %arg8[%c0_75, %c3_76], %77 {strides = array<i32>} : memref<64x7xbf16, #tpu.memory_space<vmem>>, vector<32x4xbf16>,
    %79 = vector.extract_strided_slice %76 {offsets = [0, 124], sizes = [32, 4], strides = [1, 1]} : vector<32x128xbf16> to vector<32x4xbf16>
    %c32_77 = arith.constant 32 : index
    %c3_78 = arith.constant 3 : index
    %80 = vector.load %arg8[%c32_77, %c3_78] : memref<64x7xbf16, #tpu.memory_space<vmem>>, vector<32x4xbf16>
    tpu.vector_store %arg8[%c32_77, %c3_78], %79 {strides = array<i32>} : memref<64x7xbf16, #tpu.memory_space<vmem>>, vector<32x4xbf16>,
    %c0_79 = arith.constant 0 : index
    %c124 = arith.constant 124 : index
    %81 = vector.load %arg9[%c0_79, %c124] : memref<32x256xbf16, #tpu.memory_space<vmem>>, vector<32x4xbf16>
    tpu.vector_store %arg9[%c0_79, %c124], %73 {strides = array<i32>} : memref<32x256xbf16, #tpu.memory_space<vmem>>, vector<32x4xbf16>,
    %c0_80 = arith.constant 0 : index
    %c128_81 = arith.constant 128 : index
    %82 = vector.load %arg9[%c0_80, %c128_81] : memref<32x256xbf16, #tpu.memory_space<vmem>>, vector<32x128xbf16>
    tpu.vector_store %arg9[%c0_80, %c128_81], %75 {strides = array<i32>} : memref<32x256xbf16, #tpu.memory_space<vmem>>, vector<32x128xbf16>,
    %c0_82 = arith.constant 0 : index
    %c124_83 = arith.constant 124 : index
    %83 = vector.load %arg10[%c0_82, %c124_83] : memref<32x256xbf16, #tpu.memory_space<vmem>>, vector<32x4xbf16>
    tpu.vector_store %arg10[%c0_82, %c124_83], %74 {strides = array<i32>} : memref<32x256xbf16, #tpu.memory_space<vmem>>, vector<32x4xbf16>,
    %c0_84 = arith.constant 0 : index
    %c128_85 = arith.constant 128 : index
    %84 = vector.load %arg10[%c0_84, %c128_85] : memref<32x256xbf16, #tpu.memory_space<vmem>>, vector<32x128xbf16>
    tpu.vector_store %arg10[%c0_84, %c128_85], %76 {strides = array<i32>} : memref<32x256xbf16, #tpu.memory_space<vmem>>, vector<32x128xbf16>,
    %c0_86 = arith.constant 0 : index
    %c124_87 = arith.constant 124 : index
    %85 = vector.load %arg9[%c0_86, %c124_87] : memref<32x256xbf16, #tpu.memory_space<vmem>>, vector<32x128xbf16>
    %c0_88 = arith.constant 0 : index
    %c124_89 = arith.constant 124 : index
    %86 = vector.load %arg10[%c0_88, %c124_89] : memref<32x256xbf16, #tpu.memory_space<vmem>>, vector<32x128xbf16>
    %c0_90 = arith.constant 0 : index
    %c2_91 = arith.constant 2 : index
    %87 = vector.load %arg4[%c0_90, %c2_91] : memref<64x3xf32, #tpu.memory_space<vmem>>, vector<32x1xf32>
    %c32_92 = arith.constant 32 : index
    %c2_93 = arith.constant 2 : index
    %88 = vector.load %arg4[%c32_92, %c2_93] : memref<64x3xf32, #tpu.memory_space<vmem>>, vector<32x1xf32>
    %c8 = arith.constant 8 : index
    %c0_94 = arith.constant 0 : index
    %c0_95 = arith.constant 0 : index
    %89 = vector.load %arg3[%c8, %c0_94, %c0_95] : memref<12x32x32xbf16, #tpu.memory_space<vmem>>, vector<1x32x32xbf16>
    %90 = vector.shape_cast %89 : vector<1x32x32xbf16> to vector<32x32xbf16>
    %cst_96 = arith.constant dense<0.000000e+00> : vector<32x128xf32>
    %91 = tpu.matmul %90, %85, %cst_96 {dimension_numbers = #tpu.dot_dimension_numbers<[1], [0], [0], [1], [0, 0, 1, 1], [], []>} : vector<32x32xbf16>, vector<32x128xbf16>, vector<32x128xf32> -> vector<32x128xf32>
    %c9 = arith.constant 9 : index
    %c0_97 = arith.constant 0 : index
    %c0_98 = arith.constant 0 : index
    %92 = vector.load %arg3[%c9, %c0_97, %c0_98] : memref<12x32x32xbf16, #tpu.memory_space<vmem>>, vector<1x32x32xbf16>
    %93 = vector.shape_cast %92 : vector<1x32x32xbf16> to vector<32x32xbf16>
    %cst_99 = arith.constant dense<0.000000e+00> : vector<32x128xf32>
    %94 = tpu.matmul %93, %75, %cst_99 {dimension_numbers = #tpu.dot_dimension_numbers<[1], [0], [0], [1], [0, 0, 1, 1], [], []>} : vector<32x32xbf16>, vector<32x128xbf16>, vector<32x128xf32> -> vector<32x128xf32>
    %95 = arith.addf %91, %94 : vector<32x128xf32>
    %96 = vector.broadcast %87 : vector<32x1xf32> to vector<32x128xf32>
    %97 = arith.addf %95, %96 : vector<32x128xf32>
    %c10 = arith.constant 10 : index
    %c0_100 = arith.constant 0 : index
    %c0_101 = arith.constant 0 : index
    %98 = vector.load %arg3[%c10, %c0_100, %c0_101] : memref<12x32x32xbf16, #tpu.memory_space<vmem>>, vector<1x32x32xbf16>
    %99 = vector.shape_cast %98 : vector<1x32x32xbf16> to vector<32x32xbf16>
    %cst_102 = arith.constant dense<0.000000e+00> : vector<32x128xf32>
    %100 = tpu.matmul %99, %86, %cst_102 {dimension_numbers = #tpu.dot_dimension_numbers<[1], [0], [0], [1], [0, 0, 1, 1], [], []>} : vector<32x32xbf16>, vector<32x128xbf16>, vector<32x128xf32> -> vector<32x128xf32>
    %c11 = arith.constant 11 : index
    %c0_103 = arith.constant 0 : index
    %c0_104 = arith.constant 0 : index
    %101 = vector.load %arg3[%c11, %c0_103, %c0_104] : memref<12x32x32xbf16, #tpu.memory_space<vmem>>, vector<1x32x32xbf16>
    %102 = vector.shape_cast %101 : vector<1x32x32xbf16> to vector<32x32xbf16>
    %cst_105 = arith.constant dense<0.000000e+00> : vector<32x128xf32>
    %103 = tpu.matmul %102, %76, %cst_105 {dimension_numbers = #tpu.dot_dimension_numbers<[1], [0], [0], [1], [0, 0, 1, 1], [], []>} : vector<32x32xbf16>, vector<32x128xbf16>, vector<32x128xf32> -> vector<32x128xf32>
    %104 = arith.addf %100, %103 : vector<32x128xf32>
    %105 = vector.broadcast %88 : vector<32x1xf32> to vector<32x128xf32>
    %106 = arith.addf %104, %105 : vector<32x128xf32>
    %107 = math.tanh %97 : vector<32x128xf32>
    %108 = arith.negf %106 : vector<32x128xf32>
    %109 = math.exp %108 : vector<32x128xf32>
    %cst_106 = arith.constant 1.000000e+00 : f32
    %110 = vector.broadcast %cst_106 : f32 to vector<32x128xf32>
    %111 = arith.addf %110, %109 : vector<32x128xf32>
    %112 = arith.divf %110, %111 : vector<32x128xf32>
    %113 = arith.mulf %107, %112 : vector<32x128xf32>
    %c0_107 = arith.constant 0 : index
    %c0_108 = arith.constant 0 : index
    %114 = vector.load %arg5[%c0_107, %c0_108] : memref<32x32xbf16, #tpu.memory_space<vmem>>, vector<32x32xbf16>
    %115 = arith.truncf %113 : vector<32x128xf32> to vector<32x128xbf16>
    %cst_109 = arith.constant dense<0.000000e+00> : vector<32x128xf32>
    %116 = tpu.matmul %114, %115, %cst_109 {dimension_numbers = #tpu.dot_dimension_numbers<[1], [0], [0], [1], [0, 0, 1, 1], [], []>} : vector<32x32xbf16>, vector<32x128xbf16>, vector<32x128xf32> -> vector<32x128xf32>
    %c0_110 = arith.constant 0 : index
    %c0_111 = arith.constant 0 : index
    %117 = vector.load %arg6[%c0_110, %c0_111] : memref<32x1xf32, #tpu.memory_space<vmem>>, vector<32x1xf32>
    %118 = vector.broadcast %117 : vector<32x1xf32> to vector<32x128xf32>
    %119 = arith.addf %116, %118 : vector<32x128xf32>
    %120 = arith.addf %119, %4 : vector<32x128xf32>
    %c0_112 = arith.constant 0 : index
    %c0_113 = arith.constant 0 : index
    %c0_114 = arith.constant 0 : index
    %121 = vector.load %arg7[%c0_112, %c0_113, %c0_114] : memref<1x32x128xf32, #tpu.memory_space<vmem>>, vector<1x32x128xf32>
    %122 = vector.shape_cast %121 : vector<1x32x128xf32> to vector<32x128xf32>
    %123 = vector.shape_cast %120 : vector<32x128xf32> to vector<1x32x128xf32>
    tpu.vector_store %arg7[%c0_112, %c0_113, %c0_114], %123 {strides = array<i32>} : memref<1x32x128xf32, #tpu.memory_space<vmem>>, vector<1x32x128xf32>,
    return
  }
  func.func @transform_0(%arg0: i32, %arg1: i32) -> (i32, i32, i32) {
    %c0_i32 = arith.constant 0 : i32
    %c0_i32_0 = arith.constant 0 : i32
    return %arg0, %c0_i32, %arg1 : i32, i32, i32
  }
  func.func @transform_1(%arg0: i32, %arg1: i32) -> (i32, i32, i32) {
    %c0_i32 = arith.constant 0 : i32
    %c0_i32_0 = arith.constant 0 : i32
    %c0_i32_1 = arith.constant 0 : i32
    %c0_i32_2 = arith.constant 0 : i32
    return %c0_i32, %c0_i32_0, %c0_i32_1 : i32, i32, i32
  }
  func.func @transform_2(%arg0: i32, %arg1: i32) -> (i32, i32) {
    %c0_i32 = arith.constant 0 : i32
    %c0_i32_0 = arith.constant 0 : i32
    %c0_i32_1 = arith.constant 0 : i32
    return %c0_i32, %c0_i32_0 : i32, i32
  }
  func.func @transform_3(%arg0: i32, %arg1: i32) -> (i32, i32) {
    %c0_i32 = arith.constant 0 : i32
    %c0_i32_0 = arith.constant 0 : i32
    %c0_i32_1 = arith.constant 0 : i32
    return %c0_i32, %c0_i32_0 : i32, i32
  }
  func.func @transform_4(%arg0: i32, %arg1: i32) -> (i32, i32) {
    %c0_i32 = arith.constant 0 : i32
    %c0_i32_0 = arith.constant 0 : i32
    %c0_i32_1 = arith.constant 0 : i32
    return %c0_i32, %c0_i32_0 : i32, i32
  }
  func.func @transform_5(%arg0: i32, %arg1: i32) -> (i32, i32, i32) {
    %c0_i32 = arith.constant 0 : i32
    %c0_i32_0 = arith.constant 0 : i32
    return %arg0, %c0_i32, %arg1 : i32, i32, i32
  }
}

</mosaic_0001>

<llo_original>
// kernel: tpu_custom_call.1
$region0: #{tpu_custom_call.1}
  #allocation0 [shape = 'u32[]', space=smem, size = 0x4, offset = 0x4, fixed_abs, tag = 'smem constant byte address 0x4 - core index']
  #allocation1 [shape = 'u32[144,128]{1,0:T(1,128)}', space=vmem, size = 0x12000, scoped, tag = 'internal scratch']
  #allocation2 [shape = 'bf16[64,7]{1,0:T(16,128)(2,1)}', space=vmem, size = 0x4000, scoped, tag = 'scratch operand']
  #allocation3 [shape = 'bf16[32,256]{1,0:T(16,128)(2,1)}', space=vmem, size = 0x4000, scoped, tag = 'scratch operand']
  #allocation4 [shape = 'bf16[32,256]{1,0:T(16,128)(2,1)}', space=vmem, size = 0x4000, scoped, tag = 'scratch operand']
  %s0 = inlined_call_operand.hbm [shape: f32[2,32,256], index: 0, kind: input, shape index: {}]
  %s1 = inlined_call_operand.hbm [shape: bf16[12,32,32], index: 1, kind: input, shape index: {}]
  %s2 = inlined_call_operand.vmem [shape: f32[64,3], index: 2, kind: input, shape index: {}]
  %s3 = inlined_call_operand.vmem [shape: bf16[32,32], index: 3, kind: input, shape index: {}]
  %s4 = inlined_call_operand.vmem [shape: f32[32,1], index: 4, kind: input, shape index: {}]
  %s5 = inlined_call_operand.hbm [shape: f32[2,32,256], index: 5, kind: output, shape index: {}]
  %s6 = sld [smem:[#allocation0]]
  $region65: #{tpu_custom_call.1} parent=0
    _
  %s8 = ssub.s32 1, %s6
  %s9 = scalar_select 0, %s8, %s6
  $region1: #{tpu_custom_call.1} parent=0
    #allocation5 [shape = 'u8[32768]{0}', space=vmem, size = 0x8000, scoped, tag = 'input window, operand 0']
    #allocation6 [shape = 's32[2]{0}', space=sflag, size = 0x8, scoped, tag = 'scoped memory for tpu_custom_call.1']
    #allocation7 [shape = 's32[2]{0}', space=sflag, size = 0x8, scoped, tag = 'scoped memory for tpu_custom_call.1']
    #allocation8 [shape = 'u8[98304]{0}', space=vmem, size = 0x18000, scoped, tag = 'input window, operand 1, single buffered']
    #allocation9 [shape = 's32[1]{0}', space=sflag, size = 0x4, scoped, tag = 'scoped memory for tpu_custom_call.1']
    #allocation10 [shape = 'u8[32768]{0}', space=vmem, size = 0x8000, scoped, tag = 'output window, operand 0']
    %10 = vsyncpa [#allocation6], 0
    %s11 = scalar_lea.sflag [#allocation6], 1
    %12 = vsyncpa %s11, 0
    %13 = vsyncpa [#allocation9], 0
    %14 = vsyncpa [#allocation7], 0
    %s15 = scalar_lea.sflag [#allocation7], 1
    %16 = vsyncpa %s15, 0
    loop: start=0, step=1, limit=6
    $region2: #{tpu_custom_call.1} parent=1 // loop_pre_header
      _
    $region3: #{tpu_custom_call.1} parent=1 // loop_header
      %s18 = sphi 0, %s22
      %p19 = scmp.ge.s32.totalorder %s18, 6
      %s25 = sphi 0, %s37
      %s26 = sphi 0, %s33
      %s27 = sphi 0, %s25
      %s28 = sphi 0, %s26
      %s29 = sphi 0, %s27
      %s30 = sphi 0, %s28
      %s42 = sphi 0, %s44
      %s45 = sphi 0, %s42
      %s46 = sphi 0, %s45
      %s62 = sphi 0, %s46
      %s66 = sphi 0, %s66
      %s68 = sphi 0, %s66
      %s69 = sphi 0, %s68
      %s83 = sphi 0, %s69
      %s87 = sphi 0, %s87
      %s89 = sphi 0, %s87
      %s90 = sphi 0, %s89
      %s104 = sphi 0, %s90
      %s108 = sphi 0, %s108
      %s110 = sphi 0, %s108
      %s111 = sphi 0, %s110
      %s125 = sphi 0, %s111
      %s129 = sphi 0, %s129
      %s131 = sphi 0, %s129
      %s132 = sphi 0, %s131
      %s146 = sphi 0, %s132
      %s154 = sphi 0, %s156
      %s157 = sphi 0, %s154
      %s158 = sphi 0, %s157
      %s174 = sphi 0, %s158
    $region4: #{tpu_custom_call.1} parent=1 // loop_header_branch
      %21 = sbr.rel (%p19) target = $region8
    $region5: #{tpu_custom_call.1} parent=1 // loop_body
      %s23 = ssub.s32 %s18, 1
      %s24 = ssub.s32 %s18, 2
      %s31 = sadd.s32 1, %s26
      %p32 = scmp.ge.s32.totalorder %s31, 2
      %s33 = scalar_select %p32, 0, %s31
      %s34 = sadd.s32 1, %s25
      %s35 = scalar_select %p32, %s34, %s25
      %p36 = scmp.ge.s32.totalorder %s35, 2
      %s37 = scalar_select %p36, 0, %s35
      %s38 = ssub.s32 %s25, %s37
      %s39 = ssub.s32 %s26, %s33
      %s40 = sor.u32 %s38, %s39
      %p41 = scmp.eq.s32.totalorder %s40, 0
      %s43 = sadd.s32 %s42, 1
      %s44 = scalar_select %p41, %s42, %s43
      %p47 = pneg %p41
      %p48 = scmp.eq.s32.totalorder %s18, 3
      %p49 = por %p47, %p48
      %p50 = scmp.ne.s32.totalorder %s42, %s45
      %p51 = scmp.eq.s32.totalorder %s18, 0
      %p52 = por %p50, %p51
      %p53 = scmp.ne.s32.totalorder %s42, %s45
      %p54 = scmp.eq.s32.totalorder %s23, 3
      %p55 = por %p53, %p54
      %p56 = scmp.ne.s32.totalorder %s45, %s46
      %p57 = scmp.eq.s32.totalorder %s23, 0
      %p58 = por %p56, %p57
      %p59 = scmp.ne.s32.totalorder %s45, %s46
      %p60 = scmp.eq.s32.totalorder %s24, 3
      %p61 = por %p59, %p60
      %p63 = scmp.ne.s32.totalorder %s46, %s62
      %p64 = scmp.eq.s32.totalorder %s24, 0
      %p65 = por %p63, %p64
      %s67 = sadd.s32 %s66, 1
      %p70 = scmp.eq.s32.totalorder %s18, 3
      %p71 = scmp.ne.s32.totalorder %s66, %s68
      %p72 = scmp.eq.s32.totalorder %s18, 0
      %p73 = por %p71, %p72
      %p74 = scmp.ne.s32.totalorder %s66, %s68
      %p75 = scmp.eq.s32.totalorder %s23, 3
      %p76 = por %p74, %p75
      %p77 = scmp.ne.s32.totalorder %s68, %s69
      %p78 = scmp.eq.s32.totalorder %s23, 0
      %p79 = por %p77, %p78
      %p80 = scmp.ne.s32.totalorder %s68, %s69
      %p81 = scmp.eq.s32.totalorder %s24, 3
      %p82 = por %p80, %p81
      %p84 = scmp.ne.s32.totalorder %s69, %s83
      %p85 = scmp.eq.s32.totalorder %s24, 0
      %p86 = por %p84, %p85
      %s88 = sadd.s32 %s87, 1
      %p91 = scmp.eq.s32.totalorder %s18, 3
      %p92 = scmp.ne.s32.totalorder %s87, %s89
      %p93 = scmp.eq.s32.totalorder %s18, 0
      %p94 = por %p92, %p93
      %p95 = scmp.ne.s32.totalorder %s87, %s89
      %p96 = scmp.eq.s32.totalorder %s23, 3
      %p97 = por %p95, %p96
      %p98 = scmp.ne.s32.totalorder %s89, %s90
      %p99 = scmp.eq.s32.totalorder %s23, 0
      %p100 = por %p98, %p99
      %p101 = scmp.ne.s32.totalorder %s89, %s90
      %p102 = scmp.eq.s32.totalorder %s24, 3
      %p103 = por %p101, %p102
      %p105 = scmp.ne.s32.totalorder %s90, %s104
      %p106 = scmp.eq.s32.totalorder %s24, 0
      %p107 = por %p105, %p106
      %s109 = sadd.s32 %s108, 1
      %p112 = scmp.eq.s32.totalorder %s18, 3
      %p113 = scmp.ne.s32.totalorder %s108, %s110
      %p114 = scmp.eq.s32.totalorder %s18, 0
      %p115 = por %p113, %p114
      %p116 = scmp.ne.s32.totalorder %s108, %s110
      %p117 = scmp.eq.s32.totalorder %s23, 3
      %p118 = por %p116, %p117
      %p119 = scmp.ne.s32.totalorder %s110, %s111
      %p120 = scmp.eq.s32.totalorder %s23, 0
      %p121 = por %p119, %p120
      %p122 = scmp.ne.s32.totalorder %s110, %s111
      %p123 = scmp.eq.s32.totalorder %s24, 3
      %p124 = por %p122, %p123
      %p126 = scmp.ne.s32.totalorder %s111, %s125
      %p127 = scmp.eq.s32.totalorder %s24, 0
      %p128 = por %p126, %p127
      %s130 = sadd.s32 %s129, 1
      %p133 = scmp.eq.s32.totalorder %s18, 3
      %p134 = scmp.ne.s32.totalorder %s129, %s131
      %p135 = scmp.eq.s32.totalorder %s18, 0
      %p136 = por %p134, %p135
      %p137 = scmp.ne.s32.totalorder %s129, %s131
      %p138 = scmp.eq.s32.totalorder %s23, 3
      %p139 = por %p137, %p138
      %p140 = scmp.ne.s32.totalorder %s131, %s132
      %p141 = scmp.eq.s32.totalorder %s23, 0
      %p142 = por %p140, %p141
      %p143 = scmp.ne.s32.totalorder %s131, %s132
      %p144 = scmp.eq.s32.totalorder %s24, 3
      %p145 = por %p143, %p144
      %p147 = scmp.ne.s32.totalorder %s132, %s146
      %p148 = scmp.eq.s32.totalorder %s24, 0
      %p149 = por %p147, %p148
      %s150 = ssub.s32 %s25, %s37
      %s151 = ssub.s32 %s26, %s33
      %s152 = sor.u32 %s150, %s151
      %p153 = scmp.eq.s32.totalorder %s152, 0
      %s155 = sadd.s32 %s154, 1
      %s156 = scalar_select %p153, %s154, %s155
      %p159 = pneg %p153
      %p160 = scmp.eq.s32.totalorder %s18, 3
      %p161 = por %p159, %p160
      %p162 = scmp.ne.s32.totalorder %s154, %s157
      %p163 = scmp.eq.s32.totalorder %s18, 0
      %p164 = por %p162, %p163
      %p165 = scmp.ne.s32.totalorder %s154, %s157
      %p166 = scmp.eq.s32.totalorder %s23, 3
      %p167 = por %p165, %p166
      %p168 = scmp.ne.s32.totalorder %s157, %s158
      %p169 = scmp.eq.s32.totalorder %s23, 0
      %p170 = por %p168, %p169
      %p171 = scmp.ne.s32.totalorder %s157, %s158
      %p172 = scmp.eq.s32.totalorder %s24, 3
      %p173 = por %p171, %p172
      %p175 = scmp.ne.s32.totalorder %s158, %s174
      %p176 = scmp.eq.s32.totalorder %s24, 0
      %p177 = por %p175, %p176
      %p178 = scmp.le.s32.totalorder 1, %s18
      %p179 = scmp.lt.s32.totalorder %s18, 5
      %p180 = pnand %p178, %p179
      %p181 = pneg %p180
      // Predicated region
      $region9: #{tpu_custom_call.1} parent=5 // pred_check
        _
      $region10: #{tpu_custom_call.1} parent=5 // pred_check_branch
        %183 = sbr.rel (%p180) target = $region12
      $region11: #{tpu_custom_call.1} parent=5 // pred_region
        %s184 = ssub.s32 %s18, 1
        // Predicated region
        $region13: #{tpu_custom_call.1} parent=11 // pred_check
          %p185 = pneg %p79
        $region14: #{tpu_custom_call.1} parent=11 // pred_check_branch
          %187 = sbr.rel (%p185) target = $region16
        $region15: #{tpu_custom_call.1} parent=11 // pred_region
          %s189 = ssub.s32 3072, 3072
          %190 = vsyncadd [#allocation9], %s189
          %s191 = sshll.u32 [#allocation8], 4
          %s192 = int_to_ptr.vmem [resolvable:$true] %s191
          %197 = dma.hbm_to_vmem [thread:$0]  %s1, 3072, %s192, [#allocation9], 64, 64, 4
        $region16: #{tpu_custom_call.1} parent=11 // pred_fallthru
          _
        // Predicated region
        $region17: #{tpu_custom_call.1} parent=11 // pred_check
          %p198 = pneg %p100
        $region18: #{tpu_custom_call.1} parent=11 // pred_check_branch
          %200 = sbr.rel (%p198) target = $region20
        $region19: #{tpu_custom_call.1} parent=11 // pred_region
          _
        $region20: #{tpu_custom_call.1} parent=11 // pred_fallthru
          _
        // Predicated region
        $region21: #{tpu_custom_call.1} parent=11 // pred_check
          %p201 = pneg %p121
        $region22: #{tpu_custom_call.1} parent=11 // pred_check_branch
          %203 = sbr.rel (%p201) target = $region24
        $region23: #{tpu_custom_call.1} parent=11 // pred_region
          _
        $region24: #{tpu_custom_call.1} parent=11 // pred_fallthru
          _
        // Predicated region
        $region25: #{tpu_custom_call.1} parent=11 // pred_check
          %p204 = pneg %p142
        $region26: #{tpu_custom_call.1} parent=11 // pred_check_branch
          %206 = sbr.rel (%p204) target = $region28
        $region27: #{tpu_custom_call.1} parent=11 // pred_region
          _
        $region28: #{tpu_custom_call.1} parent=11 // pred_fallthru
          _
      $region12: #{tpu_custom_call.1} parent=5 // pred_fallthru
        _
      %p207 = scmp.lt.s32.totalorder %s18, 4
      // Predicated region
      $region29: #{tpu_custom_call.1} parent=5 // pred_check
        %p208 = pneg %p207
      $region30: #{tpu_custom_call.1} parent=5 // pred_check_branch
        %210 = sbr.rel (%p208) target = $region32
      $region31: #{tpu_custom_call.1} parent=5 // pred_region
        // Predicated region
        $region33: #{tpu_custom_call.1} parent=31 // pred_check
          %p211 = pneg %p52
        $region34: #{tpu_custom_call.1} parent=31 // pred_check_branch
          %213 = sbr.rel (%p211) target = $region36
        $region35: #{tpu_custom_call.1} parent=31 // pred_region
          %s214 = sand.u32 %s42, 1
          %s215 = scalar_lea.sflag [#allocation6], %s214
          %s216 = sand.u32 %s42, 1
          %s217 = smul.addr %s216, 32
          %s218 = scalar_lea.vmem [#allocation5], %s217
          %s220 = ssub.s32 512, 512
          %221 = vsyncadd %s215, %s220
          %s222 = smul.addr %s25, 8
          %s223 = sadd.s32 %s26, %s222
          %s224 = smul.addr %s223, 128
          %s225 = scalar_lea.hbm %s0, %s224
          %s226 = sshll.u32 %s218, 4
          %s227 = int_to_ptr.vmem [resolvable:$true] %s226
          %232 = dma.hbm_to_vmem [thread:$0]  %s225, 512, %s227, %s215, 256, 128, 8
        $region36: #{tpu_custom_call.1} parent=31 // pred_fallthru
          _
      $region32: #{tpu_custom_call.1} parent=5 // pred_fallthru
        _
      %p233 = scmp.le.s32.totalorder 1, %s18
      %p234 = scmp.lt.s32.totalorder %s18, 5
      %p235 = pnand %p233, %p234
      %p236 = pneg %p235
      // Predicated region
      $region37: #{tpu_custom_call.1} parent=5 // pred_check
        _
      $region38: #{tpu_custom_call.1} parent=5 // pred_check_branch
        %238 = sbr.rel (%p235) target = $region40
      $region39: #{tpu_custom_call.1} parent=5 // pred_region
        %s239 = ssub.s32 %s18, 1
        %s240 = sand.u32 %s45, 1
        %s241 = scalar_lea.sflag [#allocation6], %s240
        %s242 = sand.u32 %s45, 1
        %s243 = smul.addr %s242, 32
        %s244 = scalar_lea.vmem [#allocation5], %s243
        // Predicated region
        $region41: #{tpu_custom_call.1} parent=39 // pred_check
          %p245 = pneg %p58
        $region42: #{tpu_custom_call.1} parent=39 // pred_check_branch
          %247 = sbr.rel (%p245) target = $region44
        $region43: #{tpu_custom_call.1} parent=39 // pred_region
          %248 = dma.done %s241, 512
        $region44: #{tpu_custom_call.1} parent=39 // pred_fallthru
          _
        // Predicated region
        $region45: #{tpu_custom_call.1} parent=39 // pred_check
          %p249 = pneg %p79
        $region46: #{tpu_custom_call.1} parent=39 // pred_check_branch
          %251 = sbr.rel (%p249) target = $region48
        $region47: #{tpu_custom_call.1} parent=39 // pred_region
          %252 = dma.done [#allocation9], 3072
        $region48: #{tpu_custom_call.1} parent=39 // pred_fallthru
          _
        %s253 = sand.u32 %s45, 1
        %s254 = scalar_lea.sflag [#allocation6], %s253
        %s255 = sand.u32 %s45, 1
        %s256 = smul.addr %s255, 32
        %s257 = scalar_lea.vmem [#allocation5], %s256
        %p258 = pneg %p58
        %p259 = pneg %p55
        %p260 = pneg %p79
        %p261 = pneg %p76
        %p262 = pneg %p100
        %p263 = pneg %p97
        %p264 = pneg %p121
        %p265 = pneg %p118
        %p266 = pneg %p142
        %p267 = pneg %p139
        %p268 = pneg %p170
        %p269 = pneg %p167
        %s270 = sand.u32 %s157, 1
        %s271 = scalar_lea.sflag [#allocation7], %s270
        %s272 = sand.u32 %s157, 1
        %s273 = smul.addr %s272, 32
        %s274 = scalar_lea.vmem [#allocation10], %s273
        %p276 = scmp.eq.s32.totalorder %s28, 0
        // Predicated region
        $region49: #{tpu_custom_call.1} parent=39 // pred_check
          %p277 = pneg %p276
        $region50: #{tpu_custom_call.1} parent=39 // pred_check_branch
          %279 = sbr.rel (%p277) target = $region52
        $region51: #{tpu_custom_call.1} parent=39 // pred_region
          %vm280 = vcmask 56320
          %281 = vst.msk [vmem:[#allocation2] sm:$0xff] %vm280, 0
          %282 = vst.msk [vmem:[#allocation2 + $0x8] sm:$0xff] %vm280, 0
          %283 = vst.msk [vmem:[#allocation2 + $0x10] sm:$0xff] %vm280, 0
          %284 = vst.msk [vmem:[#allocation2 + $0x18] sm:$0xff] %vm280, 0
        $region52: #{tpu_custom_call.1} parent=39 // pred_fallthru
          _
        %v285 = vld [vmem:[%s244] sm:$0xff]
        %v286 = vld [vmem:[%s244 + $0x8] sm:$0xff]
        %v287 = vld [vmem:[%s244 + $0x10] sm:$0xff]
        %v288 = vld [vmem:[%s244 + $0x18] sm:$0xff]
        %v289 = vld [vmem:[#allocation2] sm:$0xff]
        %v290 = vld [vmem:[#allocation2 + $0x8] sm:$0xff]
        %v291 = vld [vmem:[#allocation2 + $0x10] sm:$0xff]
        %v292 = vld [vmem:[#allocation2 + $0x18] sm:$0xff]
        %v293 = vpack.c.bf16 %v286, %v285
        %v294 = vpack.c.bf16 %v288, %v287
        %297 = vrot.lane.b32.xlu0 %v293, 1
        %v298 = vpop.permute.xlu0 %297
        %299 = vrot.lane.b32.xlu0 %v294, 1
        %v300 = vpop.permute.xlu0 %299
        %vm303 = vcmask 7168
        %304 = vst.msk [vmem:[#allocation2] sm:$0xff] %vm303, %v298
        %305 = vst.msk [vmem:[#allocation2 + $0x8] sm:$0xff] %vm303, %v300
        %306 = vst.msk [vmem:[#allocation2 + $0x10] sm:$0xff] %vm303, %v298
        %307 = vst.msk [vmem:[#allocation2 + $0x18] sm:$0xff] %vm303, %v300
        %310 = vrot.lane.b32.xlu0 %v289, 127
        %v311 = vpop.permute.xlu0 %310
        %312 = vrot.lane.b32.xlu0 %v290, 127
        %v313 = vpop.permute.xlu0 %312
        %vm316 = vcmask 1048568
        %317 = vst.msk [vmem:[#allocation3] sm:$0xff] %vm316, %v311
        %318 = vst.msk [vmem:[#allocation3 + $0x10] sm:$0xff] %vm316, %v313
        %319 = vst [vmem:[#allocation3 + $0x8] sm:$0xff] %v293
        %320 = vst [vmem:[#allocation3 + $0x18] sm:$0xff] %v294
        %323 = vrot.lane.b32.xlu0 %v291, 127
        %v324 = vpop.permute.xlu0 %323
        %325 = vrot.lane.b32.xlu0 %v292, 127
        %v326 = vpop.permute.xlu0 %325
        %329 = vst.msk [vmem:[#allocation4] sm:$0xff] %vm316, %v324
        %330 = vst.msk [vmem:[#allocation4 + $0x10] sm:$0xff] %vm316, %v326
        %331 = vst [vmem:[#allocation4 + $0x8] sm:$0xff] %v293
        %332 = vst [vmem:[#allocation4 + $0x18] sm:$0xff] %v294
        %v333 = vld [vmem:[#allocation3] sm:$0xff]
        %v334 = vld [vmem:[#allocation3 + $0x8] sm:$0xff]
        %v335 = vld [vmem:[#allocation3 + $0x10] sm:$0xff]
        %v336 = vld [vmem:[#allocation3 + $0x18] sm:$0xff]
        %v337 = vld [vmem:[#allocation4] sm:$0xff]
        %v338 = vld [vmem:[#allocation4 + $0x8] sm:$0xff]
        %v339 = vld [vmem:[#allocation4 + $0x10] sm:$0xff]
        %v340 = vld [vmem:[#allocation4 + $0x18] sm:$0xff]
        %v341 = vld [vmem:[%s2] sm:$0xff]
        %v342 = vld [vmem:[%s2 + $0x8] sm:$0xff]
        %v343 = vld [vmem:[%s2 + $0x10] sm:$0xff]
        %v344 = vld [vmem:[%s2 + $0x18] sm:$0xff]
        %v345 = vld [vmem:[%s2 + $0x20] sm:$0xff]
        %v346 = vld [vmem:[%s2 + $0x28] sm:$0xff]
        %v347 = vld [vmem:[%s2 + $0x30] sm:$0xff]
        %v348 = vld [vmem:[%s2 + $0x38] sm:$0xff]
        %v349 = vld [vmem:[#allocation8] sm:$0xf]
        %v350 = vld [vmem:[#allocation8 + $0x4] sm:$0xf]
        %v351 = vld [vmem:[#allocation8 + $0x8] sm:$0xf]
        %v352 = vld [vmem:[#allocation8 + $0xc] sm:$0xf]
        %s353 = scalar_lea.vmem [#allocation8], 16
        %v354 = vld [vmem:[%s353] sm:$0xf]
        %v355 = vld [vmem:[%s353 + $0x4] sm:$0xf]
        %v356 = vld [vmem:[%s353 + $0x8] sm:$0xf]
        %v357 = vld [vmem:[%s353 + $0xc] sm:$0xf]
        %v362 = vunpack.c.l.b16 %v354
        %v363 = vunpack.c.l.b16 %v355
        %v364 = vunpack.c.l.b16 %v356
        %v365 = vunpack.c.l.b16 %v357
        %v366 = vpack.c.b16 %v363, %v362
        %v367 = vpack.c.b16 %v365, %v364
        %vm368 = vcmask 261120
        %v370 = vsel %vm368, %v366, 0
        %v373 = vsel %vm368, %v367, 0
        %375 = vmatprep.subr.bf16.mxu0 0
        %376 = vmatpush1.bf16.msra.mxu0 %v293
        %377 = vmatprep.subr.bf16.mxu0 0
        %378 = vmatpush1.bf16.msra.mxu0 %v294
        %379 = vmatprep.subr.bf16.mxu0 0
        %380 = vmatpush1.bf16.msra.mxu0 0
        %381 = vmatprep.subr.bf16.mxu0 0
        %382 = vmatpush1.bf16.msra.mxu0 0
        %383 = vmatprep.subr.bf16.mxu0 0
        %384 = vmatpush1.bf16.msra.mxu0 0
        %385 = vmatprep.subr.bf16.mxu0 0
        %386 = vmatpush1.bf16.msra.mxu0 0
        %387 = vmatprep.subr.bf16.mxu0 0
        %388 = vmatpush1.bf16.msra.mxu0 0
        %389 = vmatprep.subr.bf16.mxu0 0
        %390 = vmatpush1.bf16.msra.mxu0 0
        %391 = vmatprep.subr.bf16.mxu0 0
        %392 = vmatpush1.bf16.msra.mxu0 0
        %393 = vmatprep.subr.bf16.mxu0 0
        %394 = vmatpush1.bf16.msra.mxu0 0
        %395 = vmatprep.subr.bf16.mxu0 0
        %396 = vmatpush1.bf16.msra.mxu0 0
        %397 = vmatprep.subr.bf16.mxu0 0
        %398 = vmatpush1.bf16.msra.mxu0 0
        %399 = vmatprep.subr.bf16.mxu0 0
        %400 = vmatpush1.bf16.msra.mxu0 0
        %401 = vmatprep.subr.bf16.mxu0 0
        %402 = vmatpush1.bf16.msra.mxu0 0
        %403 = vmatprep.subr.bf16.mxu0 0
        %404 = vmatpush1.bf16.msra.mxu0 0
        %405 = vmatprep.subr.bf16.mxu0 0
        %406 = vmatpush1.bf16.msra.mxu0 0
        %407 = vmatprep.mubr.bf16.mxu0 0
        %408 = vmatmul.mubr.bf16.gmra.mrb[0].mxu0 %v370
        %v409 = vpop.f32.mrb[0].mxu0
        %v410 = vadd.f32 0.0, %v409
        %v411 = vpop.f32.mrb[0].mxu0
        %v412 = vpop.f32.mrb[0].mxu0
        %v413 = vadd.f32 0.0, %v412
        %v414 = vpop.f32.mrb[0].mxu0
        %415 = vmatprep.mubr.bf16.mxu0 0
        %416 = vmatmul.mubr.bf16.gmra.mrb[0].mxu0 %v373
        %v417 = vpop.f32.mrb[0].mxu0
        %v418 = vadd.f32 0.0, %v417
        %v419 = vpop.f32.mrb[0].mxu0
        %v420 = vpop.f32.mrb[0].mxu0
        %v421 = vadd.f32 0.0, %v420
        %v422 = vpop.f32.mrb[0].mxu0
        %423 = vdwg.mxu0
        %v428 = vunpack.c.l.b16 %v349
        %v429 = vunpack.c.l.b16 %v350
        %v430 = vunpack.c.l.b16 %v351
        %v431 = vunpack.c.l.b16 %v352
        %v432 = vpack.c.b16 %v429, %v428
        %v433 = vpack.c.b16 %v431, %v430
        %438 = vrot.lane.b32.xlu0 %v333, 1
        %v439 = vpop.permute.xlu0 %438
        %440 = vrot.lane.b32.xlu0 %v334, 1
        %v441 = vpop.permute.xlu0 %440
        %442 = vrot.lane.b32.xlu0 %v335, 1
        %v443 = vpop.permute.xlu0 %442
        %444 = vrot.lane.b32.xlu0 %v336, 1
        %v445 = vpop.permute.xlu0 %444
        %vm446 = vcmask 7168
        %v447 = vsel %vm446, %v439, %v441
        %v448 = vsel %vm446, %v443, %v445
        %v452 = vsel %vm368, %v432, 0
        %v455 = vsel %vm368, %v433, 0
        %457 = vmatprep.subr.bf16.mxu0 0
        %458 = vmatpush1.bf16.msra.mxu0 %v447
        %459 = vmatprep.subr.bf16.mxu0 0
        %460 = vmatpush1.bf16.msra.mxu0 %v448
        %461 = vmatprep.subr.bf16.mxu0 0
        %462 = vmatpush1.bf16.msra.mxu0 0
        %463 = vmatprep.subr.bf16.mxu0 0
        %464 = vmatpush1.bf16.msra.mxu0 0
        %465 = vmatprep.subr.bf16.mxu0 0
        %466 = vmatpush1.bf16.msra.mxu0 0
        %467 = vmatprep.subr.bf16.mxu0 0
        %468 = vmatpush1.bf16.msra.mxu0 0
        %469 = vmatprep.subr.bf16.mxu0 0
        %470 = vmatpush1.bf16.msra.mxu0 0
        %471 = vmatprep.subr.bf16.mxu0 0
        %472 = vmatpush1.bf16.msra.mxu0 0
        %473 = vmatprep.subr.bf16.mxu0 0
        %474 = vmatpush1.bf16.msra.mxu0 0
        %475 = vmatprep.subr.bf16.mxu0 0
        %476 = vmatpush1.bf16.msra.mxu0 0
        %477 = vmatprep.subr.bf16.mxu0 0
        %478 = vmatpush1.bf16.msra.mxu0 0
        %479 = vmatprep.subr.bf16.mxu0 0
        %480 = vmatpush1.bf16.msra.mxu0 0
        %481 = vmatprep.subr.bf16.mxu0 0
        %482 = vmatpush1.bf16.msra.mxu0 0
        %483 = vmatprep.subr.bf16.mxu0 0
        %484 = vmatpush1.bf16.msra.mxu0 0
        %485 = vmatprep.subr.bf16.mxu0 0
        %486 = vmatpush1.bf16.msra.mxu0 0
        %487 = vmatprep.subr.bf16.mxu0 0
        %488 = vmatpush1.bf16.msra.mxu0 0
        %489 = vmatprep.mubr.bf16.mxu0 0
        %490 = vmatmul.mubr.bf16.gmra.mrb[0].mxu0 %v452
        %v491 = vpop.f32.mrb[0].mxu0
        %v492 = vadd.f32 %v410, %v491
        %v493 = vpop.f32.mrb[0].mxu0
        %v494 = vpop.f32.mrb[0].mxu0
        %v495 = vadd.f32 %v413, %v494
        %v496 = vpop.f32.mrb[0].mxu0
        %497 = vmatprep.mubr.bf16.mxu0 0
        %498 = vmatmul.mubr.bf16.gmra.mrb[0].mxu0 %v455
        %v499 = vpop.f32.mrb[0].mxu0
        %v500 = vadd.f32 %v418, %v499
        %v501 = vpop.f32.mrb[0].mxu0
        %v502 = vpop.f32.mrb[0].mxu0
        %v503 = vadd.f32 %v421, %v502
        %v504 = vpop.f32.mrb[0].mxu0
        %505 = vdwg.mxu0
        %507 = vset.pattern.permute.xlu0 0
        %508 = vperm.xlu0 %507, %v341
        %v509 = vpop.permute.xlu0 %508
        %512 = vset.pattern.permute.xlu0 0
        %513 = vperm.xlu0 %512, %v342
        %v514 = vpop.permute.xlu0 %513
        %517 = vset.pattern.permute.xlu0 0
        %518 = vperm.xlu0 %517, %v343
        %v519 = vpop.permute.xlu0 %518
        %522 = vset.pattern.permute.xlu0 0
        %523 = vperm.xlu0 %522, %v344
        %v524 = vpop.permute.xlu0 %523
        %v526 = vadd.f32 %v492, %v509
        %v527 = vadd.f32 %v495, %v514
        %v528 = vadd.f32 %v500, %v519
        %v529 = vadd.f32 %v503, %v524
        %s530 = scalar_lea.vmem [#allocation8], 32
        %v531 = vld [vmem:[%s530] sm:$0xf]
        %v532 = vld [vmem:[%s530 + $0x4] sm:$0xf]
        %v533 = vld [vmem:[%s530 + $0x8] sm:$0xf]
        %v534 = vld [vmem:[%s530 + $0xc] sm:$0xf]
        %s535 = scalar_lea.vmem [#allocation8], 48
        %v536 = vld [vmem:[%s535] sm:$0xf]
        %v537 = vld [vmem:[%s535 + $0x4] sm:$0xf]
        %v538 = vld [vmem:[%s535 + $0x8] sm:$0xf]
        %v539 = vld [vmem:[%s535 + $0xc] sm:$0xf]
        %v544 = vunpack.c.l.b16 %v536
        %v545 = vunpack.c.l.b16 %v537
        %v546 = vunpack.c.l.b16 %v538
        %v547 = vunpack.c.l.b16 %v539
        %v548 = vpack.c.b16 %v545, %v544
        %v549 = vpack.c.b16 %v547, %v546
        %v551 = vsel %vm368, %v548, 0
        %v554 = vsel %vm368, %v549, 0
        %556 = vmatprep.subr.bf16.mxu0 0
        %557 = vmatpush1.bf16.msra.mxu0 %v293
        %558 = vmatprep.subr.bf16.mxu0 0
        %559 = vmatpush1.bf16.msra.mxu0 %v294
        %560 = vmatprep.subr.bf16.mxu0 0
        %561 = vmatpush1.bf16.msra.mxu0 0
        %562 = vmatprep.subr.bf16.mxu0 0
        %563 = vmatpush1.bf16.msra.mxu0 0
        %564 = vmatprep.subr.bf16.mxu0 0
        %565 = vmatpush1.bf16.msra.mxu0 0
        %566 = vmatprep.subr.bf16.mxu0 0
        %567 = vmatpush1.bf16.msra.mxu0 0
        %568 = vmatprep.subr.bf16.mxu0 0
        %569 = vmatpush1.bf16.msra.mxu0 0
        %570 = vmatprep.subr.bf16.mxu0 0
        %571 = vmatpush1.bf16.msra.mxu0 0
        %572 = vmatprep.subr.bf16.mxu0 0
        %573 = vmatpush1.bf16.msra.mxu0 0
        %574 = vmatprep.subr.bf16.mxu0 0
        %575 = vmatpush1.bf16.msra.mxu0 0
        %576 = vmatprep.subr.bf16.mxu0 0
        %577 = vmatpush1.bf16.msra.mxu0 0
        %578 = vmatprep.subr.bf16.mxu0 0
        %579 = vmatpush1.bf16.msra.mxu0 0
        %580 = vmatprep.subr.bf16.mxu0 0
        %581 = vmatpush1.bf16.msra.mxu0 0
        %582 = vmatprep.subr.bf16.mxu0 0
        %583 = vmatpush1.bf16.msra.mxu0 0
        %584 = vmatprep.subr.bf16.mxu0 0
        %585 = vmatpush1.bf16.msra.mxu0 0
        %586 = vmatprep.subr.bf16.mxu0 0
        %587 = vmatpush1.bf16.msra.mxu0 0
        %588 = vmatprep.mubr.bf16.mxu0 0
        %589 = vmatmul.mubr.bf16.gmra.mrb[0].mxu0 %v551
        %v590 = vpop.f32.mrb[0].mxu0
        %v591 = vadd.f32 0.0, %v590
        %v592 = vpop.f32.mrb[0].mxu0
        %v593 = vpop.f32.mrb[0].mxu0
        %v594 = vadd.f32 0.0, %v593
        %v595 = vpop.f32.mrb[0].mxu0
        %596 = vmatprep.mubr.bf16.mxu0 0
        %597 = vmatmul.mubr.bf16.gmra.mrb[0].mxu0 %v554
        %v598 = vpop.f32.mrb[0].mxu0
        %v599 = vadd.f32 0.0, %v598
        %v600 = vpop.f32.mrb[0].mxu0
        %v601 = vpop.f32.mrb[0].mxu0
        %v602 = vadd.f32 0.0, %v601
        %v603 = vpop.f32.mrb[0].mxu0
        %604 = vdwg.mxu0
        %v609 = vunpack.c.l.b16 %v531
        %v610 = vunpack.c.l.b16 %v532
        %v611 = vunpack.c.l.b16 %v533
        %v612 = vunpack.c.l.b16 %v534
        %v613 = vpack.c.b16 %v610, %v609
        %v614 = vpack.c.b16 %v612, %v611
        %619 = vrot.lane.b32.xlu0 %v337, 1
        %v620 = vpop.permute.xlu0 %619
        %621 = vrot.lane.b32.xlu0 %v338, 1
        %v622 = vpop.permute.xlu0 %621
        %623 = vrot.lane.b32.xlu0 %v339, 1
        %v624 = vpop.permute.xlu0 %623
        %625 = vrot.lane.b32.xlu0 %v340, 1
        %v626 = vpop.permute.xlu0 %625
        %v627 = vsel %vm446, %v620, %v622
        %v628 = vsel %vm446, %v624, %v626
        %v632 = vsel %vm368, %v613, 0
        %v635 = vsel %vm368, %v614, 0
        %637 = vmatprep.subr.bf16.mxu0 0
        %638 = vmatpush1.bf16.msra.mxu0 %v627
        %639 = vmatprep.subr.bf16.mxu0 0
        %640 = vmatpush1.bf16.msra.mxu0 %v628
        %641 = vmatprep.subr.bf16.mxu0 0
        %642 = vmatpush1.bf16.msra.mxu0 0
        %643 = vmatprep.subr.bf16.mxu0 0
        %644 = vmatpush1.bf16.msra.mxu0 0
        %645 = vmatprep.subr.bf16.mxu0 0
        %646 = vmatpush1.bf16.msra.mxu0 0
        %647 = vmatprep.subr.bf16.mxu0 0
        %648 = vmatpush1.bf16.msra.mxu0 0
        %649 = vmatprep.subr.bf16.mxu0 0
        %650 = vmatpush1.bf16.msra.mxu0 0
        %651 = vmatprep.subr.bf16.mxu0 0
        %652 = vmatpush1.bf16.msra.mxu0 0
        %653 = vmatprep.subr.bf16.mxu0 0
        %654 = vmatpush1.bf16.msra.mxu0 0
        %655 = vmatprep.subr.bf16.mxu0 0
        %656 = vmatpush1.bf16.msra.mxu0 0
        %657 = vmatprep.subr.bf16.mxu0 0
        %658 = vmatpush1.bf16.msra.mxu0 0
        %659 = vmatprep.subr.bf16.mxu0 0
        %660 = vmatpush1.bf16.msra.mxu0 0
        %661 = vmatprep.subr.bf16.mxu0 0
        %662 = vmatpush1.bf16.msra.mxu0 0
        %663 = vmatprep.subr.bf16.mxu0 0
        %664 = vmatpush1.bf16.msra.mxu0 0
        %665 = vmatprep.subr.bf16.mxu0 0
        %666 = vmatpush1.bf16.msra.mxu0 0
        %667 = vmatprep.subr.bf16.mxu0 0
        %668 = vmatpush1.bf16.msra.mxu0 0
        %669 = vmatprep.mubr.bf16.mxu0 0
        %670 = vmatmul.mubr.bf16.gmra.mrb[0].mxu0 %v632
        %v671 = vpop.f32.mrb[0].mxu0
        %v672 = vadd.f32 %v591, %v671
        %v673 = vpop.f32.mrb[0].mxu0
        %v674 = vpop.f32.mrb[0].mxu0
        %v675 = vadd.f32 %v594, %v674
        %v676 = vpop.f32.mrb[0].mxu0
        %677 = vmatprep.mubr.bf16.mxu0 0
        %678 = vmatmul.mubr.bf16.gmra.mrb[0].mxu0 %v635
        %v679 = vpop.f32.mrb[0].mxu0
        %v680 = vadd.f32 %v599, %v679
        %v681 = vpop.f32.mrb[0].mxu0
        %v682 = vpop.f32.mrb[0].mxu0
        %v683 = vadd.f32 %v602, %v682
        %v684 = vpop.f32.mrb[0].mxu0
        %685 = vdwg.mxu0
        %687 = vset.pattern.permute.xlu0 0
        %688 = vperm.xlu0 %687, %v345
        %v689 = vpop.permute.xlu0 %688
        %692 = vset.pattern.permute.xlu0 0
        %693 = vperm.xlu0 %692, %v346
        %v694 = vpop.permute.xlu0 %693
        %697 = vset.pattern.permute.xlu0 0
        %698 = vperm.xlu0 %697, %v347
        %v699 = vpop.permute.xlu0 %698
        %702 = vset.pattern.permute.xlu0 0
        %703 = vperm.xlu0 %702, %v348
        %v704 = vpop.permute.xlu0 %703
        %v706 = vadd.f32 %v672, %v689
        %v707 = vadd.f32 %v675, %v694
        %v708 = vadd.f32 %v680, %v699
        %v709 = vadd.f32 %v683, %v704
        %v710 = vld [vmem:[#allocation2] sm:$0xff]
        %v711 = vld [vmem:[#allocation2 + $0x8] sm:$0xff]
        %v712 = vld [vmem:[#allocation2 + $0x10] sm:$0xff]
        %v713 = vld [vmem:[#allocation2 + $0x18] sm:$0xff]
        %v714 = vpack.c.bf16 %v527, %v526
        %v715 = vpack.c.bf16 %v529, %v528
        %v716 = vpack.c.bf16 %v707, %v706
        %v717 = vpack.c.bf16 %v709, %v708
        %720 = vrot.lane.b32.xlu0 %v714, 3
        %v721 = vpop.permute.xlu0 %720
        %722 = vrot.lane.b32.xlu0 %v715, 3
        %v723 = vpop.permute.xlu0 %722
        %vm726 = vcmask 23560
        %727 = vst.msk [vmem:[#allocation2] sm:$0xff] %vm726, %v721
        %728 = vst.msk [vmem:[#allocation2 + $0x8] sm:$0xff] %vm726, %v723
        %731 = vrot.lane.b32.xlu0 %v716, 3
        %v732 = vpop.permute.xlu0 %731
        %733 = vrot.lane.b32.xlu0 %v717, 3
        %v734 = vpop.permute.xlu0 %733
        %737 = vst.msk [vmem:[#allocation2 + $0x10] sm:$0xff] %vm726, %v732
        %738 = vst.msk [vmem:[#allocation2 + $0x18] sm:$0xff] %vm726, %v734
        %741 = vrot.lane.b32.xlu0 %v710, 125
        %v742 = vpop.permute.xlu0 %741
        %743 = vrot.lane.b32.xlu0 %v711, 125
        %v744 = vpop.permute.xlu0 %743
        %vm747 = vcmask 1048560
        %748 = vst.msk [vmem:[#allocation3] sm:$0xff] %vm747, %v742
        %749 = vst.msk [vmem:[#allocation3 + $0x10] sm:$0xff] %vm747, %v744
        %750 = vst [vmem:[#allocation3 + $0x8] sm:$0xff] %v714
        %751 = vst [vmem:[#allocation3 + $0x18] sm:$0xff] %v715
        %754 = vrot.lane.b32.xlu0 %v712, 125
        %v755 = vpop.permute.xlu0 %754
        %756 = vrot.lane.b32.xlu0 %v713, 125
        %v757 = vpop.permute.xlu0 %756
        %760 = vst.msk [vmem:[#allocation4] sm:$0xff] %vm747, %v755
        %761 = vst.msk [vmem:[#allocation4 + $0x10] sm:$0xff] %vm747, %v757
        %762 = vst [vmem:[#allocation4 + $0x8] sm:$0xff] %v716
        %763 = vst [vmem:[#allocation4 + $0x18] sm:$0xff] %v717
        %v764 = vld [vmem:[#allocation3] sm:$0xff]
        %v765 = vld [vmem:[#allocation3 + $0x8] sm:$0xff]
        %v766 = vld [vmem:[#allocation3 + $0x10] sm:$0xff]
        %v767 = vld [vmem:[#allocation3 + $0x18] sm:$0xff]
        %v768 = vld [vmem:[#allocation4] sm:$0xff]
        %v769 = vld [vmem:[#allocation4 + $0x8] sm:$0xff]
        %v770 = vld [vmem:[#allocation4 + $0x10] sm:$0xff]
        %v771 = vld [vmem:[#allocation4 + $0x18] sm:$0xff]
        %v772 = vld [vmem:[%s2] sm:$0xff]
        %v773 = vld [vmem:[%s2 + $0x8] sm:$0xff]
        %v774 = vld [vmem:[%s2 + $0x10] sm:$0xff]
        %v775 = vld [vmem:[%s2 + $0x18] sm:$0xff]
        %v776 = vld [vmem:[%s2 + $0x20] sm:$0xff]
        %v777 = vld [vmem:[%s2 + $0x28] sm:$0xff]
        %v778 = vld [vmem:[%s2 + $0x30] sm:$0xff]
        %v779 = vld [vmem:[%s2 + $0x38] sm:$0xff]
        %s780 = scalar_lea.vmem [#allocation8], 64
        %v781 = vld [vmem:[%s780] sm:$0xf]
        %v782 = vld [vmem:[%s780 + $0x4] sm:$0xf]
        %v783 = vld [vmem:[%s780 + $0x8] sm:$0xf]
        %v784 = vld [vmem:[%s780 + $0xc] sm:$0xf]
        %s785 = scalar_lea.vmem [#allocation8], 80
        %v786 = vld [vmem:[%s785] sm:$0xf]
        %v787 = vld [vmem:[%s785 + $0x4] sm:$0xf]
        %v788 = vld [vmem:[%s785 + $0x8] sm:$0xf]
        %v789 = vld [vmem:[%s785 + $0xc] sm:$0xf]
        %v794 = vunpack.c.l.b16 %v786
        %v795 = vunpack.c.l.b16 %v787
        %v796 = vunpack.c.l.b16 %v788
        %v797 = vunpack.c.l.b16 %v789
        %v798 = vpack.c.b16 %v795, %v794
        %v799 = vpack.c.b16 %v797, %v796
        %v801 = vsel %vm368, %v798, 0
        %v804 = vsel %vm368, %v799, 0
        %806 = vmatprep.subr.bf16.mxu0 0
        %807 = vmatpush1.bf16.msra.mxu0 %v714
        %808 = vmatprep.subr.bf16.mxu0 0
        %809 = vmatpush1.bf16.msra.mxu0 %v715
        %810 = vmatprep.subr.bf16.mxu0 0
        %811 = vmatpush1.bf16.msra.mxu0 0
        %812 = vmatprep.subr.bf16.mxu0 0
        %813 = vmatpush1.bf16.msra.mxu0 0
        %814 = vmatprep.subr.bf16.mxu0 0
        %815 = vmatpush1.bf16.msra.mxu0 0
        %816 = vmatprep.subr.bf16.mxu0 0
        %817 = vmatpush1.bf16.msra.mxu0 0
        %818 = vmatprep.subr.bf16.mxu0 0
        %819 = vmatpush1.bf16.msra.mxu0 0
        %820 = vmatprep.subr.bf16.mxu0 0
        %821 = vmatpush1.bf16.msra.mxu0 0
        %822 = vmatprep.subr.bf16.mxu0 0
        %823 = vmatpush1.bf16.msra.mxu0 0
        %824 = vmatprep.subr.bf16.mxu0 0
        %825 = vmatpush1.bf16.msra.mxu0 0
        %826 = vmatprep.subr.bf16.mxu0 0
        %827 = vmatpush1.bf16.msra.mxu0 0
        %828 = vmatprep.subr.bf16.mxu0 0
        %829 = vmatpush1.bf16.msra.mxu0 0
        %830 = vmatprep.subr.bf16.mxu0 0
        %831 = vmatpush1.bf16.msra.mxu0 0
        %832 = vmatprep.subr.bf16.mxu0 0
        %833 = vmatpush1.bf16.msra.mxu0 0
        %834 = vmatprep.subr.bf16.mxu0 0
        %835 = vmatpush1.bf16.msra.mxu0 0
        %836 = vmatprep.subr.bf16.mxu0 0
        %837 = vmatpush1.bf16.msra.mxu0 0
        %838 = vmatprep.mubr.bf16.mxu0 0
        %839 = vmatmul.mubr.bf16.gmra.mrb[0].mxu0 %v801
        %v840 = vpop.f32.mrb[0].mxu0
        %v841 = vadd.f32 0.0, %v840
        %v842 = vpop.f32.mrb[0].mxu0
        %v843 = vpop.f32.mrb[0].mxu0
        %v844 = vadd.f32 0.0, %v843
        %v845 = vpop.f32.mrb[0].mxu0
        %846 = vmatprep.mubr.bf16.mxu0 0
        %847 = vmatmul.mubr.bf16.gmra.mrb[0].mxu0 %v804
        %v848 = vpop.f32.mrb[0].mxu0
        %v849 = vadd.f32 0.0, %v848
        %v850 = vpop.f32.mrb[0].mxu0
        %v851 = vpop.f32.mrb[0].mxu0
        %v852 = vadd.f32 0.0, %v851
        %v853 = vpop.f32.mrb[0].mxu0
        %854 = vdwg.mxu0
        %v859 = vunpack.c.l.b16 %v781
        %v860 = vunpack.c.l.b16 %v782
        %v861 = vunpack.c.l.b16 %v783
        %v862 = vunpack.c.l.b16 %v784
        %v863 = vpack.c.b16 %v860, %v859
        %v864 = vpack.c.b16 %v862, %v861
        %869 = vrot.lane.b32.xlu0 %v764, 2
        %v870 = vpop.permute.xlu0 %869
        %871 = vrot.lane.b32.xlu0 %v765, 2
        %v872 = vpop.permute.xlu0 %871
        %873 = vrot.lane.b32.xlu0 %v766, 2
        %v874 = vpop.permute.xlu0 %873
        %875 = vrot.lane.b32.xlu0 %v767, 2
        %v876 = vpop.permute.xlu0 %875
        %vm877 = vcmask 15360
        %v878 = vsel %vm877, %v870, %v872
        %v879 = vsel %vm877, %v874, %v876
        %v883 = vsel %vm368, %v863, 0
        %v886 = vsel %vm368, %v864, 0
        %888 = vmatprep.subr.bf16.mxu0 0
        %889 = vmatpush1.bf16.msra.mxu0 %v878
        %890 = vmatprep.subr.bf16.mxu0 0
        %891 = vmatpush1.bf16.msra.mxu0 %v879
        %892 = vmatprep.subr.bf16.mxu0 0
        %893 = vmatpush1.bf16.msra.mxu0 0
        %894 = vmatprep.subr.bf16.mxu0 0
        %895 = vmatpush1.bf16.msra.mxu0 0
        %896 = vmatprep.subr.bf16.mxu0 0
        %897 = vmatpush1.bf16.msra.mxu0 0
        %898 = vmatprep.subr.bf16.mxu0 0
        %899 = vmatpush1.bf16.msra.mxu0 0
        %900 = vmatprep.subr.bf16.mxu0 0
        %901 = vmatpush1.bf16.msra.mxu0 0
        %902 = vmatprep.subr.bf16.mxu0 0
        %903 = vmatpush1.bf16.msra.mxu0 0
        %904 = vmatprep.subr.bf16.mxu0 0
        %905 = vmatpush1.bf16.msra.mxu0 0
        %906 = vmatprep.subr.bf16.mxu0 0
        %907 = vmatpush1.bf16.msra.mxu0 0
        %908 = vmatprep.subr.bf16.mxu0 0
        %909 = vmatpush1.bf16.msra.mxu0 0
        %910 = vmatprep.subr.bf16.mxu0 0
        %911 = vmatpush1.bf16.msra.mxu0 0
        %912 = vmatprep.subr.bf16.mxu0 0
        %913 = vmatpush1.bf16.msra.mxu0 0
        %914 = vmatprep.subr.bf16.mxu0 0
        %915 = vmatpush1.bf16.msra.mxu0 0
        %916 = vmatprep.subr.bf16.mxu0 0
        %917 = vmatpush1.bf16.msra.mxu0 0
        %918 = vmatprep.subr.bf16.mxu0 0
        %919 = vmatpush1.bf16.msra.mxu0 0
        %920 = vmatprep.mubr.bf16.mxu0 0
        %921 = vmatmul.mubr.bf16.gmra.mrb[0].mxu0 %v883
        %v922 = vpop.f32.mrb[0].mxu0
        %v923 = vadd.f32 %v841, %v922
        %v924 = vpop.f32.mrb[0].mxu0
        %v925 = vpop.f32.mrb[0].mxu0
        %v926 = vadd.f32 %v844, %v925
        %v927 = vpop.f32.mrb[0].mxu0
        %928 = vmatprep.mubr.bf16.mxu0 0
        %929 = vmatmul.mubr.bf16.gmra.mrb[0].mxu0 %v886
        %v930 = vpop.f32.mrb[0].mxu0
        %v931 = vadd.f32 %v849, %v930
        %v932 = vpop.f32.mrb[0].mxu0
        %v933 = vpop.f32.mrb[0].mxu0
        %v934 = vadd.f32 %v852, %v933
        %v935 = vpop.f32.mrb[0].mxu0
        %936 = vdwg.mxu0
        %938 = vset.pattern.permute.xlu0 1
        %939 = vperm.xlu0 %938, %v772
        %v940 = vpop.permute.xlu0 %939
        %943 = vset.pattern.permute.xlu0 1
        %944 = vperm.xlu0 %943, %v773
        %v945 = vpop.permute.xlu0 %944
        %948 = vset.pattern.permute.xlu0 1
        %949 = vperm.xlu0 %948, %v774
        %v950 = vpop.permute.xlu0 %949
        %953 = vset.pattern.permute.xlu0 1
        %954 = vperm.xlu0 %953, %v775
        %v955 = vpop.permute.xlu0 %954
        %v957 = vadd.f32 %v923, %v940
        %v958 = vadd.f32 %v926, %v945
        %v959 = vadd.f32 %v931, %v950
        %v960 = vadd.f32 %v934, %v955
        %s961 = scalar_lea.vmem [#allocation8], 96
        %v962 = vld [vmem:[%s961] sm:$0xf]
        %v963 = vld [vmem:[%s961 + $0x4] sm:$0xf]
        %v964 = vld [vmem:[%s961 + $0x8] sm:$0xf]
        %v965 = vld [vmem:[%s961 + $0xc] sm:$0xf]
        %s966 = scalar_lea.vmem [#allocation8], 112
        %v967 = vld [vmem:[%s966] sm:$0xf]
        %v968 = vld [vmem:[%s966 + $0x4] sm:$0xf]
        %v969 = vld [vmem:[%s966 + $0x8] sm:$0xf]
        %v970 = vld [vmem:[%s966 + $0xc] sm:$0xf]
        %v975 = vunpack.c.l.b16 %v967
        %v976 = vunpack.c.l.b16 %v968
        %v977 = vunpack.c.l.b16 %v969
        %v978 = vunpack.c.l.b16 %v970
        %v979 = vpack.c.b16 %v976, %v975
        %v980 = vpack.c.b16 %v978, %v977
        %v982 = vsel %vm368, %v979, 0
        %v985 = vsel %vm368, %v980, 0
        %987 = vmatprep.subr.bf16.mxu0 0
        %988 = vmatpush1.bf16.msra.mxu0 %v716
        %989 = vmatprep.subr.bf16.mxu0 0
        %990 = vmatpush1.bf16.msra.mxu0 %v717
        %991 = vmatprep.subr.bf16.mxu0 0
        %992 = vmatpush1.bf16.msra.mxu0 0
        %993 = vmatprep.subr.bf16.mxu0 0
        %994 = vmatpush1.bf16.msra.mxu0 0
        %995 = vmatprep.subr.bf16.mxu0 0
        %996 = vmatpush1.bf16.msra.mxu0 0
        %997 = vmatprep.subr.bf16.mxu0 0
        %998 = vmatpush1.bf16.msra.mxu0 0
        %999 = vmatprep.subr.bf16.mxu0 0
        %1000 = vmatpush1.bf16.msra.mxu0 0
        %1001 = vmatprep.subr.bf16.mxu0 0
        %1002 = vmatpush1.bf16.msra.mxu0 0
        %1003 = vmatprep.subr.bf16.mxu0 0
        %1004 = vmatpush1.bf16.msra.mxu0 0
        %1005 = vmatprep.subr.bf16.mxu0 0
        %1006 = vmatpush1.bf16.msra.mxu0 0
        %1007 = vmatprep.subr.bf16.mxu0 0
        %1008 = vmatpush1.bf16.msra.mxu0 0
        %1009 = vmatprep.subr.bf16.mxu0 0
        %1010 = vmatpush1.bf16.msra.mxu0 0
        %1011 = vmatprep.subr.bf16.mxu0 0
        %1012 = vmatpush1.bf16.msra.mxu0 0
        %1013 = vmatprep.subr.bf16.mxu0 0
        %1014 = vmatpush1.bf16.msra.mxu0 0
        %1015 = vmatprep.subr.bf16.mxu0 0
        %1016 = vmatpush1.bf16.msra.mxu0 0
        %1017 = vmatprep.subr.bf16.mxu0 0
        %1018 = vmatpush1.bf16.msra.mxu0 0
        %1019 = vmatprep.mubr.bf16.mxu0 0
        %1020 = vmatmul.mubr.bf16.gmra.mrb[0].mxu0 %v982
        %v1021 = vpop.f32.mrb[0].mxu0
        %v1022 = vadd.f32 0.0, %v1021
        %v1023 = vpop.f32.mrb[0].mxu0
        %v1024 = vpop.f32.mrb[0].mxu0
        %v1025 = vadd.f32 0.0, %v1024
        %v1026 = vpop.f32.mrb[0].mxu0
        %1027 = vmatprep.mubr.bf16.mxu0 0
        %1028 = vmatmul.mubr.bf16.gmra.mrb[0].mxu0 %v985
        %v1029 = vpop.f32.mrb[0].mxu0
        %v1030 = vadd.f32 0.0, %v1029
        %v1031 = vpop.f32.mrb[0].mxu0
        %v1032 = vpop.f32.mrb[0].mxu0
        %v1033 = vadd.f32 0.0, %v1032
        %v1034 = vpop.f32.mrb[0].mxu0
        %1035 = vdwg.mxu0
        %v1040 = vunpack.c.l.b16 %v962
        %v1041 = vunpack.c.l.b16 %v963
        %v1042 = vunpack.c.l.b16 %v964
        %v1043 = vunpack.c.l.b16 %v965
        %v1044 = vpack.c.b16 %v1041, %v1040
        %v1045 = vpack.c.b16 %v1043, %v1042
        %1050 = vrot.lane.b32.xlu0 %v768, 2
        %v1051 = vpop.permute.xlu0 %1050
        %1052 = vrot.lane.b32.xlu0 %v769, 2
        %v1053 = vpop.permute.xlu0 %1052
        %1054 = vrot.lane.b32.xlu0 %v770, 2
        %v1055 = vpop.permute.xlu0 %1054
        %1056 = vrot.lane.b32.xlu0 %v771, 2
        %v1057 = vpop.permute.xlu0 %1056
        %v1058 = vsel %vm877, %v1051, %v1053
        %v1059 = vsel %vm877, %v1055, %v1057
        %v1063 = vsel %vm368, %v1044, 0
        %v1066 = vsel %vm368, %v1045, 0
        %1068 = vmatprep.subr.bf16.mxu0 0
        %1069 = vmatpush1.bf16.msra.mxu0 %v1058
        %1070 = vmatprep.subr.bf16.mxu0 0
        %1071 = vmatpush1.bf16.msra.mxu0 %v1059
        %1072 = vmatprep.subr.bf16.mxu0 0
        %1073 = vmatpush1.bf16.msra.mxu0 0
        %1074 = vmatprep.subr.bf16.mxu0 0
        %1075 = vmatpush1.bf16.msra.mxu0 0
        %1076 = vmatprep.subr.bf16.mxu0 0
        %1077 = vmatpush1.bf16.msra.mxu0 0
        %1078 = vmatprep.subr.bf16.mxu0 0
        %1079 = vmatpush1.bf16.msra.mxu0 0
        %1080 = vmatprep.subr.bf16.mxu0 0
        %1081 = vmatpush1.bf16.msra.mxu0 0
        %1082 = vmatprep.subr.bf16.mxu0 0
        %1083 = vmatpush1.bf16.msra.mxu0 0
        %1084 = vmatprep.subr.bf16.mxu0 0
        %1085 = vmatpush1.bf16.msra.mxu0 0
        %1086 = vmatprep.subr.bf16.mxu0 0
        %1087 = vmatpush1.bf16.msra.mxu0 0
        %1088 = vmatprep.subr.bf16.mxu0 0
        %1089 = vmatpush1.bf16.msra.mxu0 0
        %1090 = vmatprep.subr.bf16.mxu0 0
        %1091 = vmatpush1.bf16.msra.mxu0 0
        %1092 = vmatprep.subr.bf16.mxu0 0
        %1093 = vmatpush1.bf16.msra.mxu0 0
        %1094 = vmatprep.subr.bf16.mxu0 0
        %1095 = vmatpush1.bf16.msra.mxu0 0
        %1096 = vmatprep.subr.bf16.mxu0 0
        %1097 = vmatpush1.bf16.msra.mxu0 0
        %1098 = vmatprep.subr.bf16.mxu0 0
        %1099 = vmatpush1.bf16.msra.mxu0 0
        %1100 = vmatprep.mubr.bf16.mxu0 0
        %1101 = vmatmul.mubr.bf16.gmra.mrb[0].mxu0 %v1063
        %v1102 = vpop.f32.mrb[0].mxu0
        %v1103 = vadd.f32 %v1022, %v1102
        %v1104 = vpop.f32.mrb[0].mxu0
        %v1105 = vpop.f32.mrb[0].mxu0
        %v1106 = vadd.f32 %v1025, %v1105
        %v1107 = vpop.f32.mrb[0].mxu0
        %1108 = vmatprep.mubr.bf16.mxu0 0
        %1109 = vmatmul.mubr.bf16.gmra.mrb[0].mxu0 %v1066
        %v1110 = vpop.f32.mrb[0].mxu0
        %v1111 = vadd.f32 %v1030, %v1110
        %v1112 = vpop.f32.mrb[0].mxu0
        %v1113 = vpop.f32.mrb[0].mxu0
        %v1114 = vadd.f32 %v1033, %v1113
        %v1115 = vpop.f32.mrb[0].mxu0
        %1116 = vdwg.mxu0
        %1118 = vset.pattern.permute.xlu0 1
        %1119 = vperm.xlu0 %1118, %v776
        %v1120 = vpop.permute.xlu0 %1119
        %1123 = vset.pattern.permute.xlu0 1
        %1124 = vperm.xlu0 %1123, %v777
        %v1125 = vpop.permute.xlu0 %1124
        %1128 = vset.pattern.permute.xlu0 1
        %1129 = vperm.xlu0 %1128, %v778
        %v1130 = vpop.permute.xlu0 %1129
        %1133 = vset.pattern.permute.xlu0 1
        %1134 = vperm.xlu0 %1133, %v779
        %v1135 = vpop.permute.xlu0 %1134
        %v1137 = vadd.f32 %v1103, %v1120
        %v1138 = vadd.f32 %v1106, %v1125
        %v1139 = vadd.f32 %v1111, %v1130
        %v1140 = vadd.f32 %v1114, %v1135
        %v1141 = vld [vmem:[#allocation2] sm:$0xff]
        %v1142 = vld [vmem:[#allocation2 + $0x8] sm:$0xff]
        %v1143 = vld [vmem:[#allocation2 + $0x10] sm:$0xff]
        %v1144 = vld [vmem:[#allocation2 + $0x18] sm:$0xff]
        %v1145 = vpack.c.bf16 %v958, %v957
        %v1146 = vpack.c.bf16 %v960, %v959
        %v1147 = vpack.c.bf16 %v1138, %v1137
        %v1148 = vpack.c.bf16 %v1140, %v1139
        %1151 = vrot.lane.b32.xlu0 %v1145, 7
        %v1152 = vpop.permute.xlu0 %1151
        %1153 = vrot.lane.b32.xlu0 %v1146, 7
        %v1154 = vpop.permute.xlu0 %1153
        %vm1157 = vcmask 56344
        %1158 = vst.msk [vmem:[#allocation2] sm:$0xff] %vm1157, %v1152
        %1159 = vst.msk [vmem:[#allocation2 + $0x8] sm:$0xff] %vm1157, %v1154
        %1162 = vrot.lane.b32.xlu0 %v1147, 7
        %v1163 = vpop.permute.xlu0 %1162
        %1164 = vrot.lane.b32.xlu0 %v1148, 7
        %v1165 = vpop.permute.xlu0 %1164
        %1168 = vst.msk [vmem:[#allocation2 + $0x10] sm:$0xff] %vm1157, %v1163
        %1169 = vst.msk [vmem:[#allocation2 + $0x18] sm:$0xff] %vm1157, %v1165
        %1172 = vrot.lane.b32.xlu0 %v1141, 121
        %v1173 = vpop.permute.xlu0 %1172
        %1174 = vrot.lane.b32.xlu0 %v1142, 121
        %v1175 = vpop.permute.xlu0 %1174
        %vm1178 = vcmask 1048544
        %1179 = vst.msk [vmem:[#allocation3] sm:$0xff] %vm1178, %v1173
        %1180 = vst.msk [vmem:[#allocation3 + $0x10] sm:$0xff] %vm1178, %v1175
        %1181 = vst [vmem:[#allocation3 + $0x8] sm:$0xff] %v1145
        %1182 = vst [vmem:[#allocation3 + $0x18] sm:$0xff] %v1146
        %1185 = vrot.lane.b32.xlu0 %v1143, 121
        %v1186 = vpop.permute.xlu0 %1185
        %1187 = vrot.lane.b32.xlu0 %v1144, 121
        %v1188 = vpop.permute.xlu0 %1187
        %1191 = vst.msk [vmem:[#allocation4] sm:$0xff] %vm1178, %v1186
        %1192 = vst.msk [vmem:[#allocation4 + $0x10] sm:$0xff] %vm1178, %v1188
        %1193 = vst [vmem:[#allocation4 + $0x8] sm:$0xff] %v1147
        %1194 = vst [vmem:[#allocation4 + $0x18] sm:$0xff] %v1148
        %v1195 = vld [vmem:[#allocation3] sm:$0xff]
        %v1196 = vld [vmem:[#allocation3 + $0x8] sm:$0xff]
        %v1197 = vld [vmem:[#allocation3 + $0x10] sm:$0xff]
        %v1198 = vld [vmem:[#allocation3 + $0x18] sm:$0xff]
        %v1199 = vld [vmem:[#allocation4] sm:$0xff]
        %v1200 = vld [vmem:[#allocation4 + $0x8] sm:$0xff]
        %v1201 = vld [vmem:[#allocation4 + $0x10] sm:$0xff]
        %v1202 = vld [vmem:[#allocation4 + $0x18] sm:$0xff]
        %v1203 = vld [vmem:[%s2] sm:$0xff]
        %v1204 = vld [vmem:[%s2 + $0x8] sm:$0xff]
        %v1205 = vld [vmem:[%s2 + $0x10] sm:$0xff]
        %v1206 = vld [vmem:[%s2 + $0x18] sm:$0xff]
        %v1207 = vld [vmem:[%s2 + $0x20] sm:$0xff]
        %v1208 = vld [vmem:[%s2 + $0x28] sm:$0xff]
        %v1209 = vld [vmem:[%s2 + $0x30] sm:$0xff]
        %v1210 = vld [vmem:[%s2 + $0x38] sm:$0xff]
        %s1211 = scalar_lea.vmem [#allocation8], 128
        %v1212 = vld [vmem:[%s1211] sm:$0xf]
        %v1213 = vld [vmem:[%s1211 + $0x4] sm:$0xf]
        %v1214 = vld [vmem:[%s1211 + $0x8] sm:$0xf]
        %v1215 = vld [vmem:[%s1211 + $0xc] sm:$0xf]
        %s1216 = scalar_lea.vmem [#allocation8], 144
        %v1217 = vld [vmem:[%s1216] sm:$0xf]
        %v1218 = vld [vmem:[%s1216 + $0x4] sm:$0xf]
        %v1219 = vld [vmem:[%s1216 + $0x8] sm:$0xf]
        %v1220 = vld [vmem:[%s1216 + $0xc] sm:$0xf]
        %v1225 = vunpack.c.l.b16 %v1217
        %v1226 = vunpack.c.l.b16 %v1218
        %v1227 = vunpack.c.l.b16 %v1219
        %v1228 = vunpack.c.l.b16 %v1220
        %v1229 = vpack.c.b16 %v1226, %v1225
        %v1230 = vpack.c.b16 %v1228, %v1227
        %v1232 = vsel %vm368, %v1229, 0
        %v1235 = vsel %vm368, %v1230, 0
        %1237 = vmatprep.subr.bf16.mxu0 0
        %1238 = vmatpush1.bf16.msra.mxu0 %v1145
        %1239 = vmatprep.subr.bf16.mxu0 0
        %1240 = vmatpush1.bf16.msra.mxu0 %v1146
        %1241 = vmatprep.subr.bf16.mxu0 0
        %1242 = vmatpush1.bf16.msra.mxu0 0
        %1243 = vmatprep.subr.bf16.mxu0 0
        %1244 = vmatpush1.bf16.msra.mxu0 0
        %1245 = vmatprep.subr.bf16.mxu0 0
        %1246 = vmatpush1.bf16.msra.mxu0 0
        %1247 = vmatprep.subr.bf16.mxu0 0
        %1248 = vmatpush1.bf16.msra.mxu0 0
        %1249 = vmatprep.subr.bf16.mxu0 0
        %1250 = vmatpush1.bf16.msra.mxu0 0
        %1251 = vmatprep.subr.bf16.mxu0 0
        %1252 = vmatpush1.bf16.msra.mxu0 0
        %1253 = vmatprep.subr.bf16.mxu0 0
        %1254 = vmatpush1.bf16.msra.mxu0 0
        %1255 = vmatprep.subr.bf16.mxu0 0
        %1256 = vmatpush1.bf16.msra.mxu0 0
        %1257 = vmatprep.subr.bf16.mxu0 0
        %1258 = vmatpush1.bf16.msra.mxu0 0
        %1259 = vmatprep.subr.bf16.mxu0 0
        %1260 = vmatpush1.bf16.msra.mxu0 0
        %1261 = vmatprep.subr.bf16.mxu0 0
        %1262 = vmatpush1.bf16.msra.mxu0 0
        %1263 = vmatprep.subr.bf16.mxu0 0
        %1264 = vmatpush1.bf16.msra.mxu0 0
        %1265 = vmatprep.subr.bf16.mxu0 0
        %1266 = vmatpush1.bf16.msra.mxu0 0
        %1267 = vmatprep.subr.bf16.mxu0 0
        %1268 = vmatpush1.bf16.msra.mxu0 0
        %1269 = vmatprep.mubr.bf16.mxu0 0
        %1270 = vmatmul.mubr.bf16.gmra.mrb[0].mxu0 %v1232
        %v1271 = vpop.f32.mrb[0].mxu0
        %v1272 = vadd.f32 0.0, %v1271
        %v1273 = vpop.f32.mrb[0].mxu0
        %v1274 = vpop.f32.mrb[0].mxu0
        %v1275 = vadd.f32 0.0, %v1274
        %v1276 = vpop.f32.mrb[0].mxu0
        %1277 = vmatprep.mubr.bf16.mxu0 0
        %1278 = vmatmul.mubr.bf16.gmra.mrb[0].mxu0 %v1235
        %v1279 = vpop.f32.mrb[0].mxu0
        %v1280 = vadd.f32 0.0, %v1279
        %v1281 = vpop.f32.mrb[0].mxu0
        %v1282 = vpop.f32.mrb[0].mxu0
        %v1283 = vadd.f32 0.0, %v1282
        %v1284 = vpop.f32.mrb[0].mxu0
        %1285 = vdwg.mxu0
        %v1290 = vunpack.c.l.b16 %v1212
        %v1291 = vunpack.c.l.b16 %v1213
        %v1292 = vunpack.c.l.b16 %v1214
        %v1293 = vunpack.c.l.b16 %v1215
        %v1294 = vpack.c.b16 %v1291, %v1290
        %v1295 = vpack.c.b16 %v1293, %v1292
        %1300 = vrot.lane.b32.xlu0 %v1195, 4
        %v1301 = vpop.permute.xlu0 %1300
        %1302 = vrot.lane.b32.xlu0 %v1196, 4
        %v1303 = vpop.permute.xlu0 %1302
        %1304 = vrot.lane.b32.xlu0 %v1197, 4
        %v1305 = vpop.permute.xlu0 %1304
        %1306 = vrot.lane.b32.xlu0 %v1198, 4
        %v1307 = vpop.permute.xlu0 %1306
        %vm1308 = vcmask 31744
        %v1309 = vsel %vm1308, %v1301, %v1303
        %v1310 = vsel %vm1308, %v1305, %v1307
        %v1314 = vsel %vm368, %v1294, 0
        %v1317 = vsel %vm368, %v1295, 0
        %1319 = vmatprep.subr.bf16.mxu0 0
        %1320 = vmatpush1.bf16.msra.mxu0 %v1309
        %1321 = vmatprep.subr.bf16.mxu0 0
        %1322 = vmatpush1.bf16.msra.mxu0 %v1310
        %1323 = vmatprep.subr.bf16.mxu0 0
        %1324 = vmatpush1.bf16.msra.mxu0 0
        %1325 = vmatprep.subr.bf16.mxu0 0
        %1326 = vmatpush1.bf16.msra.mxu0 0
        %1327 = vmatprep.subr.bf16.mxu0 0
        %1328 = vmatpush1.bf16.msra.mxu0 0
        %1329 = vmatprep.subr.bf16.mxu0 0
        %1330 = vmatpush1.bf16.msra.mxu0 0
        %1331 = vmatprep.subr.bf16.mxu0 0
        %1332 = vmatpush1.bf16.msra.mxu0 0
        %1333 = vmatprep.subr.bf16.mxu0 0
        %1334 = vmatpush1.bf16.msra.mxu0 0
        %1335 = vmatprep.subr.bf16.mxu0 0
        %1336 = vmatpush1.bf16.msra.mxu0 0
        %1337 = vmatprep.subr.bf16.mxu0 0
        %1338 = vmatpush1.bf16.msra.mxu0 0
        %1339 = vmatprep.subr.bf16.mxu0 0
        %1340 = vmatpush1.bf16.msra.mxu0 0
        %1341 = vmatprep.subr.bf16.mxu0 0
        %1342 = vmatpush1.bf16.msra.mxu0 0
        %1343 = vmatprep.subr.bf16.mxu0 0
        %1344 = vmatpush1.bf16.msra.mxu0 0
        %1345 = vmatprep.subr.bf16.mxu0 0
        %1346 = vmatpush1.bf16.msra.mxu0 0
        %1347 = vmatprep.subr.bf16.mxu0 0
        %1348 = vmatpush1.bf16.msra.mxu0 0
        %1349 = vmatprep.subr.bf16.mxu0 0
        %1350 = vmatpush1.bf16.msra.mxu0 0
        %1351 = vmatprep.mubr.bf16.mxu0 0
        %1352 = vmatmul.mubr.bf16.gmra.mrb[0].mxu0 %v1314
        %v1353 = vpop.f32.mrb[0].mxu0
        %v1354 = vadd.f32 %v1272, %v1353
        %v1355 = vpop.f32.mrb[0].mxu0
        %v1356 = vpop.f32.mrb[0].mxu0
        %v1357 = vadd.f32 %v1275, %v1356
        %v1358 = vpop.f32.mrb[0].mxu0
        %1359 = vmatprep.mubr.bf16.mxu0 0
        %1360 = vmatmul.mubr.bf16.gmra.mrb[0].mxu0 %v1317
        %v1361 = vpop.f32.mrb[0].mxu0
        %v1362 = vadd.f32 %v1280, %v1361
        %v1363 = vpop.f32.mrb[0].mxu0
        %v1364 = vpop.f32.mrb[0].mxu0
        %v1365 = vadd.f32 %v1283, %v1364
        %v1366 = vpop.f32.mrb[0].mxu0
        %1367 = vdwg.mxu0
        %1369 = vset.pattern.permute.xlu0 2
        %1370 = vperm.xlu0 %1369, %v1203
        %v1371 = vpop.permute.xlu0 %1370
        %1374 = vset.pattern.permute.xlu0 2
        %1375 = vperm.xlu0 %1374, %v1204
        %v1376 = vpop.permute.xlu0 %1375
        %1379 = vset.pattern.permute.xlu0 2
        %1380 = vperm.xlu0 %1379, %v1205
        %v1381 = vpop.permute.xlu0 %1380
        %1384 = vset.pattern.permute.xlu0 2
        %1385 = vperm.xlu0 %1384, %v1206
        %v1386 = vpop.permute.xlu0 %1385
        %v1388 = vadd.f32 %v1354, %v1371
        %v1389 = vadd.f32 %v1357, %v1376
        %v1390 = vadd.f32 %v1362, %v1381
        %v1391 = vadd.f32 %v1365, %v1386
        %s1392 = scalar_lea.vmem [#allocation8], 160
        %v1393 = vld [vmem:[%s1392] sm:$0xf]
        %v1394 = vld [vmem:[%s1392 + $0x4] sm:$0xf]
        %v1395 = vld [vmem:[%s1392 + $0x8] sm:$0xf]
        %v1396 = vld [vmem:[%s1392 + $0xc] sm:$0xf]
        %s1397 = scalar_lea.vmem [#allocation8], 176
        %v1398 = vld [vmem:[%s1397] sm:$0xf]
        %v1399 = vld [vmem:[%s1397 + $0x4] sm:$0xf]
        %v1400 = vld [vmem:[%s1397 + $0x8] sm:$0xf]
        %v1401 = vld [vmem:[%s1397 + $0xc] sm:$0xf]
        %v1406 = vunpack.c.l.b16 %v1398
        %v1407 = vunpack.c.l.b16 %v1399
        %v1408 = vunpack.c.l.b16 %v1400
        %v1409 = vunpack.c.l.b16 %v1401
        %v1410 = vpack.c.b16 %v1407, %v1406
        %v1411 = vpack.c.b16 %v1409, %v1408
        %v1413 = vsel %vm368, %v1410, 0
        %v1416 = vsel %vm368, %v1411, 0
        %1418 = vmatprep.subr.bf16.mxu0 0
        %1419 = vmatpush1.bf16.msra.mxu0 %v1147
        %1420 = vmatprep.subr.bf16.mxu0 0
        %1421 = vmatpush1.bf16.msra.mxu0 %v1148
        %1422 = vmatprep.subr.bf16.mxu0 0
        %1423 = vmatpush1.bf16.msra.mxu0 0
        %1424 = vmatprep.subr.bf16.mxu0 0
        %1425 = vmatpush1.bf16.msra.mxu0 0
        %1426 = vmatprep.subr.bf16.mxu0 0
        %1427 = vmatpush1.bf16.msra.mxu0 0
        %1428 = vmatprep.subr.bf16.mxu0 0
        %1429 = vmatpush1.bf16.msra.mxu0 0
        %1430 = vmatprep.subr.bf16.mxu0 0
        %1431 = vmatpush1.bf16.msra.mxu0 0
        %1432 = vmatprep.subr.bf16.mxu0 0
        %1433 = vmatpush1.bf16.msra.mxu0 0
        %1434 = vmatprep.subr.bf16.mxu0 0
        %1435 = vmatpush1.bf16.msra.mxu0 0
        %1436 = vmatprep.subr.bf16.mxu0 0
        %1437 = vmatpush1.bf16.msra.mxu0 0
        %1438 = vmatprep.subr.bf16.mxu0 0
        %1439 = vmatpush1.bf16.msra.mxu0 0
        %1440 = vmatprep.subr.bf16.mxu0 0
        %1441 = vmatpush1.bf16.msra.mxu0 0
        %1442 = vmatprep.subr.bf16.mxu0 0
        %1443 = vmatpush1.bf16.msra.mxu0 0
        %1444 = vmatprep.subr.bf16.mxu0 0
        %1445 = vmatpush1.bf16.msra.mxu0 0
        %1446 = vmatprep.subr.bf16.mxu0 0
        %1447 = vmatpush1.bf16.msra.mxu0 0
        %1448 = vmatprep.subr.bf16.mxu0 0
        %1449 = vmatpush1.bf16.msra.mxu0 0
        %1450 = vmatprep.mubr.bf16.mxu0 0
        %1451 = vmatmul.mubr.bf16.gmra.mrb[0].mxu0 %v1413
        %v1452 = vpop.f32.mrb[0].mxu0
        %v1453 = vadd.f32 0.0, %v1452
        %v1454 = vpop.f32.mrb[0].mxu0
        %v1455 = vpop.f32.mrb[0].mxu0
        %v1456 = vadd.f32 0.0, %v1455
        %v1457 = vpop.f32.mrb[0].mxu0
        %1458 = vmatprep.mubr.bf16.mxu0 0
        %1459 = vmatmul.mubr.bf16.gmra.mrb[0].mxu0 %v1416
        %v1460 = vpop.f32.mrb[0].mxu0
        %v1461 = vadd.f32 0.0, %v1460
        %v1462 = vpop.f32.mrb[0].mxu0
        %v1463 = vpop.f32.mrb[0].mxu0
        %v1464 = vadd.f32 0.0, %v1463
        %v1465 = vpop.f32.mrb[0].mxu0
        %1466 = vdwg.mxu0
        %v1471 = vunpack.c.l.b16 %v1393
        %v1472 = vunpack.c.l.b16 %v1394
        %v1473 = vunpack.c.l.b16 %v1395
        %v1474 = vunpack.c.l.b16 %v1396
        %v1475 = vpack.c.b16 %v1472, %v1471
        %v1476 = vpack.c.b16 %v1474, %v1473
        %1481 = vrot.lane.b32.xlu0 %v1199, 4
        %v1482 = vpop.permute.xlu0 %1481
        %1483 = vrot.lane.b32.xlu0 %v1200, 4
        %v1484 = vpop.permute.xlu0 %1483
        %1485 = vrot.lane.b32.xlu0 %v1201, 4
        %v1486 = vpop.permute.xlu0 %1485
        %1487 = vrot.lane.b32.xlu0 %v1202, 4
        %v1488 = vpop.permute.xlu0 %1487
        %v1489 = vsel %vm1308, %v1482, %v1484
        %v1490 = vsel %vm1308, %v1486, %v1488
        %v1494 = vsel %vm368, %v1475, 0
        %v1497 = vsel %vm368, %v1476, 0
        %1499 = vmatprep.subr.bf16.mxu0 0
        %1500 = vmatpush1.bf16.msra.mxu0 %v1489
        %1501 = vmatprep.subr.bf16.mxu0 0
        %1502 = vmatpush1.bf16.msra.mxu0 %v1490
        %1503 = vmatprep.subr.bf16.mxu0 0
        %1504 = vmatpush1.bf16.msra.mxu0 0
        %1505 = vmatprep.subr.bf16.mxu0 0
        %1506 = vmatpush1.bf16.msra.mxu0 0
        %1507 = vmatprep.subr.bf16.mxu0 0
        %1508 = vmatpush1.bf16.msra.mxu0 0
        %1509 = vmatprep.subr.bf16.mxu0 0
        %1510 = vmatpush1.bf16.msra.mxu0 0
        %1511 = vmatprep.subr.bf16.mxu0 0
        %1512 = vmatpush1.bf16.msra.mxu0 0
        %1513 = vmatprep.subr.bf16.mxu0 0
        %1514 = vmatpush1.bf16.msra.mxu0 0
        %1515 = vmatprep.subr.bf16.mxu0 0
        %1516 = vmatpush1.bf16.msra.mxu0 0
        %1517 = vmatprep.subr.bf16.mxu0 0
        %1518 = vmatpush1.bf16.msra.mxu0 0
        %1519 = vmatprep.subr.bf16.mxu0 0
        %1520 = vmatpush1.bf16.msra.mxu0 0
        %1521 = vmatprep.subr.bf16.mxu0 0
        %1522 = vmatpush1.bf16.msra.mxu0 0
        %1523 = vmatprep.subr.bf16.mxu0 0
        %1524 = vmatpush1.bf16.msra.mxu0 0
        %1525 = vmatprep.subr.bf16.mxu0 0
        %1526 = vmatpush1.bf16.msra.mxu0 0
        %1527 = vmatprep.subr.bf16.mxu0 0
        %1528 = vmatpush1.bf16.msra.mxu0 0
        %1529 = vmatprep.subr.bf16.mxu0 0
        %1530 = vmatpush1.bf16.msra.mxu0 0
        %1531 = vmatprep.mubr.bf16.mxu0 0
        %1532 = vmatmul.mubr.bf16.gmra.mrb[0].mxu0 %v1494
        %v1533 = vpop.f32.mrb[0].mxu0
        %v1534 = vadd.f32 %v1453, %v1533
        %v1535 = vpop.f32.mrb[0].mxu0
        %v1536 = vpop.f32.mrb[0].mxu0
        %v1537 = vadd.f32 %v1456, %v1536
        %v1538 = vpop.f32.mrb[0].mxu0
        %1539 = vmatprep.mubr.bf16.mxu0 0
        %1540 = vmatmul.mubr.bf16.gmra.mrb[0].mxu0 %v1497
        %v1541 = vpop.f32.mrb[0].mxu0
        %v1542 = vadd.f32 %v1461, %v1541
        %v1543 = vpop.f32.mrb[0].mxu0
        %v1544 = vpop.f32.mrb[0].mxu0
        %v1545 = vadd.f32 %v1464, %v1544
        %v1546 = vpop.f32.mrb[0].mxu0
        %1547 = vdwg.mxu0
        %1549 = vset.pattern.permute.xlu0 2
        %1550 = vperm.xlu0 %1549, %v1207
        %v1551 = vpop.permute.xlu0 %1550
        %1554 = vset.pattern.permute.xlu0 2
        %1555 = vperm.xlu0 %1554, %v1208
        %v1556 = vpop.permute.xlu0 %1555
        %1559 = vset.pattern.permute.xlu0 2
        %1560 = vperm.xlu0 %1559, %v1209
        %v1561 = vpop.permute.xlu0 %1560
        %1564 = vset.pattern.permute.xlu0 2
        %1565 = vperm.xlu0 %1564, %v1210
        %v1566 = vpop.permute.xlu0 %1565
        %v1568 = vadd.f32 %v1534, %v1551
        %v1569 = vadd.f32 %v1537, %v1556
        %v1570 = vadd.f32 %v1542, %v1561
        %v1571 = vadd.f32 %v1545, %v1566
        %v1572 = vtanh.pop %v1388
        %v1573 = vtanh.pop %v1389
        %v1574 = vtanh.pop %v1390
        %v1575 = vtanh.pop %v1391
        %v1576 = vxor.u32 %v1568, 2147483648
        %v1577 = vxor.u32 %v1569, 2147483648
        %v1578 = vxor.u32 %v1570, 2147483648
        %v1579 = vxor.u32 %v1571, 2147483648
        %v1580 = vmul.f32 %v1576, 1.442695
        %v1581 = vpow.pop %v1580
        %v1582 = vmul.f32 %v1577, 1.442695
        %v1583 = vpow.pop %v1582
        %v1584 = vmul.f32 %v1578, 1.442695
        %v1585 = vpow.pop %v1584
        %v1586 = vmul.f32 %v1579, 1.442695
        %v1587 = vpow.pop %v1586
        %v1588 = vadd.f32 %v1581, 1.0
        %v1589 = vadd.f32 %v1583, 1.0
        %v1590 = vadd.f32 %v1585, 1.0
        %v1591 = vadd.f32 %v1587, 1.0
        %v1592 = vrcp.pop %v1588
        %v1593 = vmul.f32 1.0, %v1592
        %v1594 = vrcp.pop %v1589
        %v1595 = vmul.f32 1.0, %v1594
        %v1596 = vrcp.pop %v1590
        %v1597 = vmul.f32 1.0, %v1596
        %v1598 = vrcp.pop %v1591
        %v1599 = vmul.f32 1.0, %v1598
        %v1600 = vmul.f32 %v1572, %v1593
        %v1601 = vmul.f32 %v1573, %v1595
        %v1602 = vmul.f32 %v1574, %v1597
        %v1603 = vmul.f32 %v1575, %v1599
        %v1604 = vld [vmem:[%s3] sm:$0xf]
        %v1605 = vld [vmem:[%s3 + $0x4] sm:$0xf]
        %v1606 = vld [vmem:[%s3 + $0x8] sm:$0xf]
        %v1607 = vld [vmem:[%s3 + $0xc] sm:$0xf]
        %v1608 = vpack.c.bf16 %v1601, %v1600
        %v1609 = vpack.c.bf16 %v1603, %v1602
        %v1610 = vld [vmem:[%s4] sm:$0xff]
        %v1611 = vld [vmem:[%s4 + $0x8] sm:$0xff]
        %v1612 = vld [vmem:[%s4 + $0x10] sm:$0xff]
        %v1613 = vld [vmem:[%s4 + $0x18] sm:$0xff]
        %1615 = vset.pattern.permute.xlu0 0
        %1616 = vperm.xlu0 %1615, %v1610
        %v1617 = vpop.permute.xlu0 %1616
        %1620 = vset.pattern.permute.xlu0 0
        %1621 = vperm.xlu0 %1620, %v1611
        %v1622 = vpop.permute.xlu0 %1621
        %1625 = vset.pattern.permute.xlu0 0
        %1626 = vperm.xlu0 %1625, %v1612
        %v1627 = vpop.permute.xlu0 %1626
        %1630 = vset.pattern.permute.xlu0 0
        %1631 = vperm.xlu0 %1630, %v1613
        %v1632 = vpop.permute.xlu0 %1631
        %v1638 = vunpack.c.l.b16 %v1604
        %v1639 = vunpack.c.l.b16 %v1605
        %v1640 = vunpack.c.l.b16 %v1606
        %v1641 = vunpack.c.l.b16 %v1607
        %v1642 = vpack.c.b16 %v1639, %v1638
        %v1643 = vpack.c.b16 %v1641, %v1640
        %v1645 = vsel %vm368, %v1642, 0
        %v1648 = vsel %vm368, %v1643, 0
        %1650 = vmatprep.subr.bf16.mxu0 0
        %1651 = vmatpush1.bf16.msra.mxu0 %v1608
        %1652 = vmatprep.subr.bf16.mxu0 0
        %1653 = vmatpush1.bf16.msra.mxu0 %v1609
        %1654 = vmatprep.subr.bf16.mxu0 0
        %1655 = vmatpush1.bf16.msra.mxu0 0
        %1656 = vmatprep.subr.bf16.mxu0 0
        %1657 = vmatpush1.bf16.msra.mxu0 0
        %1658 = vmatprep.subr.bf16.mxu0 0
        %1659 = vmatpush1.bf16.msra.mxu0 0
        %1660 = vmatprep.subr.bf16.mxu0 0
        %1661 = vmatpush1.bf16.msra.mxu0 0
        %1662 = vmatprep.subr.bf16.mxu0 0
        %1663 = vmatpush1.bf16.msra.mxu0 0
        %1664 = vmatprep.subr.bf16.mxu0 0
        %1665 = vmatpush1.bf16.msra.mxu0 0
        %1666 = vmatprep.subr.bf16.mxu0 0
        %1667 = vmatpush1.bf16.msra.mxu0 0
        %1668 = vmatprep.subr.bf16.mxu0 0
        %1669 = vmatpush1.bf16.msra.mxu0 0
        %1670 = vmatprep.subr.bf16.mxu0 0
        %1671 = vmatpush1.bf16.msra.mxu0 0
        %1672 = vmatprep.subr.bf16.mxu0 0
        %1673 = vmatpush1.bf16.msra.mxu0 0
        %1674 = vmatprep.subr.bf16.mxu0 0
        %1675 = vmatpush1.bf16.msra.mxu0 0
        %1676 = vmatprep.subr.bf16.mxu0 0
        %1677 = vmatpush1.bf16.msra.mxu0 0
        %1678 = vmatprep.subr.bf16.mxu0 0
        %1679 = vmatpush1.bf16.msra.mxu0 0
        %1680 = vmatprep.subr.bf16.mxu0 0
        %1681 = vmatpush1.bf16.msra.mxu0 0
        %1682 = vmatprep.mubr.bf16.mxu0 0
        %1683 = vmatmul.mubr.bf16.gmra.mrb[0].mxu0 %v1645
        %v1684 = vpop.f32.mrb[0].mxu0
        %v1685 = vadd.f32 %v1617, %v1684
        %v1686 = vpop.f32.mrb[0].mxu0
        %v1687 = vpop.f32.mrb[0].mxu0
        %v1688 = vadd.f32 %v1622, %v1687
        %v1689 = vpop.f32.mrb[0].mxu0
        %1690 = vmatprep.mubr.bf16.mxu0 0
        %1691 = vmatmul.mubr.bf16.gmra.mrb[0].mxu0 %v1648
        %v1692 = vpop.f32.mrb[0].mxu0
        %v1693 = vadd.f32 %v1627, %v1692
        %v1694 = vpop.f32.mrb[0].mxu0
        %v1695 = vpop.f32.mrb[0].mxu0
        %v1696 = vadd.f32 %v1632, %v1695
        %v1697 = vpop.f32.mrb[0].mxu0
        %1698 = vdwg.mxu0
        %v1699 = vadd.f32 %v1685, %v285
        %v1700 = vadd.f32 %v1688, %v286
        %v1701 = vadd.f32 %v1693, %v287
        %v1702 = vadd.f32 %v1696, %v288
        %1703 = vst [vmem:[%s274] sm:$0xff] %v1699
        %1704 = vst [vmem:[%s274 + $0x8] sm:$0xff] %v1700
        %1705 = vst [vmem:[%s274 + $0x10] sm:$0xff] %v1701
        %1706 = vst [vmem:[%s274 + $0x18] sm:$0xff] %v1702
        %s1707 = sand.u32 %s157, 1
        %s1708 = scalar_lea.sflag [#allocation7], %s1707
        %s1709 = sand.u32 %s157, 1
        %s1710 = smul.addr %s1709, 32
        %s1711 = scalar_lea.vmem [#allocation10], %s1710
        // Predicated region
        $region53: #{tpu_custom_call.1} parent=39 // pred_check
          %p1712 = pneg %p167
        $region54: #{tpu_custom_call.1} parent=39 // pred_check_branch
          %1714 = sbr.rel (%p1712) target = $region56
        $region55: #{tpu_custom_call.1} parent=39 // pred_region
          %s1716 = ssub.s32 512, 512
          %1717 = vsyncadd %s1708, %s1716
          %s1718 = smul.addr %s27, 8
          %s1719 = sadd.s32 %s28, %s1718
          %s1720 = smul.addr %s1719, 128
          %s1721 = scalar_lea.hbm %s5, %s1720
          %s1722 = sshll.u32 %s1711, 4
          %s1723 = int_to_ptr.vmem [resolvable:$true] %s1722
          %1728 = dma.vmem_to_hbm [thread:$0]  %s1723, 512, %s1721, %s1708, 128, 256, 8
        $region56: #{tpu_custom_call.1} parent=39 // pred_fallthru
          _
      $region40: #{tpu_custom_call.1} parent=5 // pred_fallthru
        _
      %p1729 = scmp.le.s32.totalorder 2, %s18
      // Predicated region
      $region57: #{tpu_custom_call.1} parent=5 // pred_check
        %p1730 = pneg %p1729
      $region58: #{tpu_custom_call.1} parent=5 // pred_check_branch
        %1732 = sbr.rel (%p1730) target = $region60
      $region59: #{tpu_custom_call.1} parent=5 // pred_region
        %s1733 = ssub.s32 %s18, 2
        // Predicated region
        $region61: #{tpu_custom_call.1} parent=59 // pred_check
          %p1734 = pneg %p173
        $region62: #{tpu_custom_call.1} parent=59 // pred_check_branch
          %1736 = sbr.rel (%p1734) target = $region64
        $region63: #{tpu_custom_call.1} parent=59 // pred_region
          %s1737 = sand.u32 %s158, 1
          %s1738 = scalar_lea.sflag [#allocation7], %s1737
          %s1739 = sand.u32 %s158, 1
          %s1740 = smul.addr %s1739, 32
          %s1741 = scalar_lea.vmem [#allocation10], %s1740
          %1742 = dma.done %s1738, 512
        $region64: #{tpu_custom_call.1} parent=59 // pred_fallthru
          _
      $region60: #{tpu_custom_call.1} parent=5 // pred_fallthru
        _
    $region6: #{tpu_custom_call.1} parent=1 // loop_footer
      %s22 = sadd.s32 1, %s18
    $region7: #{tpu_custom_call.1} parent=1 // loop_footer_branch
      %17 = sbr.rel target = $region3
    $region8: #{tpu_custom_call.1} parent=1 // loop_exit
      _
    %1743 = vsyncpa [#allocation6], 1
    %s1744 = scalar_lea.sflag [#allocation6], 1
    %1745 = vsyncpa %s1744, 1
    %1746 = vsyncpa [#allocation9], 1
    %1747 = vsyncpa [#allocation7], 1
    %s1748 = scalar_lea.sflag [#allocation7], 1
    %1749 = vsyncpa %s1748, 1

</llo_original>
